<compile_context>
chip_gen: v7x
topology: tpu7x:2x2x1
jax: 0.10.0
libtpu: 0.0.40
codegen_flags: <defaults>
</compile_context>

<pallas_src>
import jax
import jax.numpy as jnp
from jax.experimental import pallas as pl
from jax.experimental.pallas import tpu as pltpu

TIME_WINDOW = 4
DECAY = 0.25
THRESH = 0.5

LANE = 128
_TARGET_BLOCK_BYTES = 1 << 20    # ~1 MiB input slab per grid step (HBM roofline saturates well below this)
_VMEM_CAP_BYTES = 48 << 20       # stay well inside v7x's 64 MiB per-TensorCore VMEM


# ---------------------------------------------------------------------------
# Tiling helper
# ---------------------------------------------------------------------------
def _n_tiling(n, c, in_itemsize, b):
    """Pick a 128-lane tile over N (dividing the padded N) targeting ~1 MiB input blocks."""
    m = pl.cdiv(n, LANE)                                        # number of 128-lane columns
    per_col_bytes = TIME_WINDOW * c * in_itemsize * LANE
    target = max(1, _TARGET_BLOCK_BYTES // per_col_bytes)
    if b < 2:
        # guarantee >= 2 grid blocks when possible so both v7x TensorCores get work
        target = min(target, max(1, m // 2))
    d = max(1, min(m, target))
    while m % d:                                                # d must divide the padded lane count
        d -= 1
    return d * LANE, m * LANE                                   # (tile_n, n_pad)


# ---------------------------------------------------------------------------
# Kernel A: fused q/k/v  (1x1 conv with folded BN scale) + bias + LIF epilogue
# ---------------------------------------------------------------------------
def _qkv_conv_bn_lif_kernel(w_ref, b_ref, x_ref, oq_ref, ok_ref, ov_ref):
    # w_ref: (3, C, C) bf16 (BN scale folded); b_ref: (3, C, 1) f32
    # x_ref: (T, C, tn) bf16 activations;  o*_ref: (T, C, tn) bf16 spikes
    outs = (oq_ref, ok_ref, ov_ref)
    ws = [w_ref[j] for j in range(3)]
    bs = [b_ref[j] for j in range(3)]
    mems = [None, None, None]
    spks = [None, None, None]
    for t in range(TIME_WINDOW):
        xt = x_ref[t]
        for j in range(3):
            y = jnp.dot(ws[j], xt, preferred_element_type=jnp.float32) + bs[j]
            if t == 0:
                mems[j] = y
            else:
                # mem*decay*(1-spike) + y  ==  where(spike, y, mem*decay + y)
                mems[j] = jnp.where(spks[j], y, mems[j] * DECAY + y)
            spks[j] = mems[j] > THRESH
            outs[j][t] = spks[j].astype(outs[j].dtype)          # store eagerly, keep live state minimal


def qkv_conv_bn_lif(x, wq, bq, wk, bk, wv, bv, *, spike_dtype=jnp.bfloat16):
    """Fused q/k/v branches.  x: (T, B, C, N) activations; weights already have the BN
    scale folded in, biases are the folded BN biases.  Returns three (T, B, C, N)
    spike tensors in `spike_dtype` (channel-major, same layout as the conv output)."""
    T, B, C, N = x.shape
    assert T == TIME_WINDOW
    w = jnp.stack([wq, wk, wv]).astype(jnp.bfloat16)            # (3, C, C)
    bias = jnp.stack([bq, bk, bv]).reshape(3, C, 1).astype(jnp.float32)
    xin = x.astype(jnp.bfloat16)

    in_itemsize = 2
    tn, n_pad = _n_tiling(N, C, in_itemsize, B)
    if n_pad != N:
        # TODO(synk): ragged H*W falls back to a pad/slice round trip; feature-map sizes
        # are almost always a multiple of 128 so this path is cold.
        xin = jnp.pad(xin, ((0, 0), (0, 0), (0, 0), (0, n_pad - N)))
    grid = (B, n_pad // tn)

    in_bytes = T * C * tn * in_itemsize
    out_bytes = T * C * tn * jnp.dtype(spike_dtype).itemsize
    live_bytes = 8 * C * tn * 4                                 # mems/spikes/xt/y temporaries (f32)
    vmem_limit = int(min(2 * (in_bytes + 3 * out_bytes) + 2 * w.size * 2
                         + live_bytes + (12 << 20), _VMEM_CAP_BYTES))

    blk = (TIME_WINDOW, None, C, tn)                            # batch dim squeezed out of the kernel Ref
    bmap = lambda b_, n_: (0, b_, 0, n_)
    out_sds = jax.ShapeDtypeStruct((T, B, C, n_pad), spike_dtype)

    q, k, v = pl.pallas_call(
        _qkv_conv_bn_lif_kernel,
        out_shape=(out_sds, out_sds, out_sds),
        grid_spec=pltpu.PrefetchScalarGridSpec(
            num_scalar_prefetch=0,
            grid=grid,
            in_specs=[
                pl.BlockSpec((3, C, C), lambda b_, n_: (0, 0, 0)),
                pl.BlockSpec((3, C, 1), lambda b_, n_: (0, 0, 0)),
                pl.BlockSpec(blk, bmap),
            ],
            out_specs=(pl.BlockSpec(blk, bmap),
                       pl.BlockSpec(blk, bmap),
                       pl.BlockSpec(blk, bmap)),
        ),
        compiler_params=pltpu.CompilerParams(
            dimension_semantics=("parallel", "parallel"),
            vmem_limit_bytes=vmem_limit,
        ),
    )(w, bias, xin)

    if n_pad != N:
        q, k, v = q[..., :N], k[..., :N], v[..., :N]
    return q, k, v


# ---------------------------------------------------------------------------
# Kernel B: attn_lif prologue + proj 1x1 conv (folded BN) + bias + proj_lif epilogue
# ---------------------------------------------------------------------------
def _attn_proj_kernel(w_ref, b_ref, x_ref, o_ref):
    # w_ref: (C, C) bf16; b_ref: (C, 1) f32; x_ref: (T, C, tn) attn values (bf16)
    w = w_ref[...]
    bias = b_ref[...]
    mem_in = spk_in = mem_out = spk_out = None
    for t in range(TIME_WINDOW):
        xt = x_ref[t].astype(jnp.float32)
        if t == 0:
            mem_in = xt
        else:
            mem_in = jnp.where(spk_in, xt, mem_in * DECAY + xt)
        spk_in = mem_in > THRESH
        y = jnp.dot(w, spk_in.astype(w.dtype), preferred_element_type=jnp.float32) + bias
        if t == 0:
            mem_out = y
        else:
            mem_out = jnp.where(spk_out, y, mem_out * DECAY + y)
        spk_out = mem_out > THRESH
        o_ref[t] = spk_out.astype(o_ref.dtype)


def attn_lif_proj_bn_lif(attn, w, bias, *, out_dtype):
    """attn: (T, B, C, N) attention values.  Runs attn_lif -> proj conv + folded BN ->
    proj_lif in a single pass.  Returns (T, B, C, N) spikes in `out_dtype`."""
    T, B, C, N = attn.shape
    assert T == TIME_WINDOW
    w_b = w.astype(jnp.bfloat16)
    b2 = bias.reshape(C, 1).astype(jnp.float32)
    xin = attn.astype(jnp.bfloat16)

    tn, n_pad = _n_tiling(N, C, 2, B)
    if n_pad != N:
        xin = jnp.pad(xin, ((0, 0), (0, 0), (0, 0), (0, n_pad - N)))
    grid = (B, n_pad // tn)

    in_bytes = T * C * tn * 2
    out_bytes = T * C * tn * jnp.dtype(out_dtype).itemsize
    live_bytes = 6 * C * tn * 4
    vmem_limit = int(min(2 * (in_bytes + out_bytes) + 2 * w_b.size * 2
                         + live_bytes + (12 << 20), _VMEM_CAP_BYTES))

    blk = (TIME_WINDOW, None, C, tn)
    bmap = lambda b_, n_: (0, b_, 0, n_)

    out = pl.pallas_call(
        _attn_proj_kernel,
        out_shape=jax.ShapeDtypeStruct((T, B, C, n_pad), out_dtype),
        grid_spec=pltpu.PrefetchScalarGridSpec(
            num_scalar_prefetch=0,
            grid=grid,
            in_specs=[
                pl.BlockSpec((C, C), lambda b_, n_: (0, 0)),
                pl.BlockSpec((C, 1), lambda b_, n_: (0, 0)),
                pl.BlockSpec(blk, bmap),
            ],
            out_specs=pl.BlockSpec(blk, bmap),
        ),
        compiler_params=pltpu.CompilerParams(
            dimension_semantics=("parallel", "parallel"),
            vmem_limit_bytes=vmem_limit,
        ),
    )(w_b, b2, xin)

    if n_pad != N:
        out = out[..., :N]
    return out


# ---------------------------------------------------------------------------
# SSA forward pass
# ---------------------------------------------------------------------------
def ssa_forward(x, params, num_heads, res_attn=None):
    """Forward of the SSA module (inference-mode BatchNorm, running stats folded)."""
    del res_attn                                                # unused by the PyTorch forward as well
    T, B, C, H, W = x.shape
    N = H * W
    hd = C // num_heads
    attn_scale = 0.125
    xf = x.reshape(T, B, C, N)

    def fold(p):                                                # fold BN scale into the conv weight
        w, s, b = p
        return s[:, None] * w, b

    qw, qb = fold(params["q"])
    kw, kb = fold(params["k"])
    vw, vb = fold(params["v"])
    q_c, k_c, v_c = qkv_conv_bn_lif(xf, qw, qb, kw, kb, vw, vb)   # (T,B,C,N) bf16 spikes

    # Channel-major head split (free reshape, no transpose): (T,B,h,hd,N)
    qh = q_c.reshape(T, B, num_heads, hd, N)
    kh = k_c.reshape(T, B, num_heads, hd, N)
    vh = v_c.reshape(T, B, num_heads, hd, N)

    # TODO(synk): per-head contractions (head_dim = C // num_heads, tiny) left to XLA einsum;
    # expressed directly on the channel-major layout so no explicit transposes are materialized.
    kv = jnp.einsum("tbhdn,tbhen->tbhde", kh, vh, preferred_element_type=jnp.float32)
    attn = jnp.einsum("tbhdn,tbhde->tbhen", qh, kv, preferred_element_type=jnp.float32) * attn_scale
    attn = attn.reshape(T, B, C, N)

    pw, pb = fold(params["proj"])
    out = attn_lif_proj_bn_lif(attn, pw, pb, out_dtype=x.dtype).reshape(T, B, C, H, W)

    v_out = vh.transpose(0, 1, 2, 4, 3).astype(x.dtype)           # (T,B,h,N,hd) — module's return layout
    return out, v_out


# ---------------------------------------------------------------------------
# Pure-JAX references (mirror the bf16 casts of the kernel path)
# ---------------------------------------------------------------------------
def _lif_ref(x):
    mem = x[0]
    spike = (mem > THRESH).astype(x.dtype)
    outs = [spike]
    for i in range(1, x.shape[0]):
        mem = mem * DECAY * (1.0 - spike) + x[i]
        spike = (mem > THRESH).astype(x.dtype)
        outs.append(spike)
    return jnp.stack(outs, axis=0)


def _conv_bn_ref(xf, w_folded, bias):
    y = jnp.einsum("oc,tbcn->tbon", w_folded.astype(jnp.bfloat16), xf.astype(jnp.bfloat16),
                   preferred_element_type=jnp.float32)
    return y + bias[None, None, :, None]


def _ssa_ref(x, params, num_heads):
    T, B, C, H, W = x.shape
    N = H * W
    hd = C // num_heads
    xf = x.reshape(T, B, C, N)

    def branch(p):
        w, s, b = p
        return _lif_ref(_conv_bn_ref(xf, s[:, None] * w, b)).astype(jnp.bfloat16)

    q_c, k_c, v_c = branch(params["q"]), branch(params["k"]), branch(params["v"])
    qh, kh, vh = (t.reshape(T, B, num_heads, hd, N) for t in (q_c, k_c, v_c))
    kv = jnp.einsum("tbhdn,tbhen->tbhde", kh, vh, preferred_element_type=jnp.float32)
    attn = jnp.einsum("tbhdn,tbhde->tbhen", qh, kv, preferred_element_type=jnp.float32) * 0.125
    attn = attn.reshape(T, B, C, N).astype(jnp.bfloat16)

    a_spk = _lif_ref(attn.astype(jnp.float32)).astype(jnp.bfloat16)
    pw, ps, pb = params["proj"]
    y = jnp.einsum("oc,tbcn->tbon", (ps[:, None] * pw).astype(jnp.bfloat16), a_spk,
                   preferred_element_type=jnp.float32) + pb[None, None, :, None]
    out = _lif_ref(y).astype(x.dtype).reshape(T, B, C, H, W)
    v_out = vh.transpose(0, 1, 2, 4, 3).astype(x.dtype)
    return out, v_out


def _mismatch(a, b):
    return float(jnp.mean((a != b).astype(jnp.float32)))


def _is_binary(a):
    return bool(jnp.all((a == 0) | (a == 1)))


# ---------------------------------------------------------------------------
# Self-test
# ---------------------------------------------------------------------------
if __name__ == "__main__":
    T, B, C, H, W = TIME_WINDOW, 2, 32, 16, 16
    num_heads = 8
    N = H * W
    key = jax.random.PRNGKey(0)
    keys = jax.random.split(key, 8)
    x = jax.random.normal(keys[0], (T, B, C, H, W), dtype=jnp.float32)

    def branch_params(k, with_conv_bias=False):
        kw, kg, kb, km, kvv, kc = jax.random.split(k, 6)
        w = 0.1 * jax.random.normal(kw, (C, C), jnp.float32)
        gamma = 1.0 + 0.1 * jax.random.normal(kg, (C,), jnp.float32)
        beta = 0.1 * jax.random.normal(kb, (C,), jnp.float32)
        mean = 0.1 * jax.random.normal(km, (C,), jnp.float32)
        var = 1.0 + 0.1 * jax.random.uniform(kvv, (C,), jnp.float32)
        scale = gamma * jax.lax.rsqrt(var + 1e-5)
        bias = beta - mean * scale
        if with_conv_bias:                         # PyTorch proj_conv has bias=True; fold it into the BN bias
            conv_b = 0.1 * jax.random.normal(kc, (C,), jnp.float32)
            bias = bias + conv_b * scale
        return w, scale, bias

    params = {
        "q": branch_params(keys[1]),
        "k": branch_params(keys[2]),
        "v": branch_params(keys[3]),
        "proj": branch_params(keys[4], with_conv_bias=True),
    }

    xf = x.reshape(T, B, C, N)

    def fold(p):
        w, s, b = p
        return s[:, None] * w, b

    # --- unit check 1: fused q/k/v conv+BN+LIF kernel vs pure-JAX reference ---
    qw_e, qb_e = fold(params["q"]); kw_e, kb_e = fold(params["k"]); vw_e, vb_e = fold(params["v"])
    q_k, k_k, v_k = qkv_conv_bn_lif(xf, qw_e, qb_e, kw_e, kb_e, vw_e, vb_e)
    q_k = jax.block_until_ready(q_k)

    def branch_ref(p):
        w, s, b = p
        return _lif_ref(_conv_bn_ref(xf, s[:, None] * w, b)).astype(jnp.bfloat16)

    for got, ref in ((q_k, branch_ref(params["q"])),
                     (k_k, branch_ref(params["k"])),
                     (v_k, branch_ref(params["v"]))):
        assert got.shape == (T, B, C, N) and got.dtype == jnp.bfloat16
        assert _is_binary(got)
        assert _mismatch(got, ref) < 1e-2          # only borderline-threshold flips allowed

    # --- unit check 2: fused attn_lif + proj conv/BN + proj_lif kernel vs reference ---
    attn_t = jax.random.normal(keys[5], (T, B, C, N), jnp.float32)
    pw_e, pb_e = fold(params["proj"])
    proj_out = jax.block_until_ready(attn_lif_proj_bn_lif(attn_t, pw_e, pb_e, out_dtype=jnp.float32))
    a_spk = _lif_ref(attn_t.astype(jnp.bfloat16).astype(jnp.float32)).astype(jnp.bfloat16)
    y_ref = jnp.einsum("oc,tbcn->tbon", pw_e.astype(jnp.bfloat16), a_spk,
                       preferred_element_type=jnp.float32) + pb_e[None, None, :, None]
    proj_ref = _lif_ref(y_ref)
    assert proj_out.shape == (T, B, C, N) and proj_out.dtype == jnp.float32
    assert _is_binary(proj_out)
    assert _mismatch(proj_out, proj_ref) < 1e-2

    # --- full SSA forward vs pure-JAX reference ---
    out, v_out = ssa_forward(x, params, num_heads)
    out = jax.block_until_ready(out)
    v_out = jax.block_until_ready(v_out)
    ref_out, ref_v = _ssa_ref(x, params, num_heads)

    assert out.shape == (T, B, C, H, W) and out.dtype == x.dtype
    assert v_out.shape == (T, B, num_heads, N, C // num_heads) and v_out.dtype == x.dtype
    assert _is_binary(out) and _is_binary(v_out)
    assert _mismatch(out, ref_out) < 1e-2
    assert _mismatch(v_out, ref_v) < 1e-2

    print("KERNEL_OK")
</pallas_src>

<mosaic_0001>
module attributes {stable_mosaic.version = 11 : i64} {
  func.func @_qkv_conv_bn_lif_kernel(%arg0: i32, %arg1: i32, %arg2: memref<3x32x32xbf16, #tpu.memory_space<vmem>>, %arg3: memref<3x32x1xf32, #tpu.memory_space<vmem>>, %arg4: memref<4x1x32x256xbf16, #tpu.memory_space<vmem>>, %arg5: memref<4x1x32x256xbf16, #tpu.memory_space<vmem>>, %arg6: memref<4x1x32x256xbf16, #tpu.memory_space<vmem>>, %arg7: memref<4x1x32x256xbf16, #tpu.memory_space<vmem>>) attributes {dimension_semantics = [#tpu.dimension_semantics<parallel>, #tpu.dimension_semantics<parallel>], iteration_bounds = array<i64: 2, 1>, scalar_prefetch = 0 : i64, scratch_operands = 0 : i64, tpu.core_type = #tpu.core_type<tc>, window_params = [{pipeline_mode = #tpu.pipeline_mode<synchronous>, transform_indices = @transform_0, window_bounds = array<i64: 3, 32, 32>}, {pipeline_mode = #tpu.pipeline_mode<synchronous>, transform_indices = @transform_1, window_bounds = array<i64: 3, 32, 1>}, {transform_indices = @transform_2, window_bounds = array<i64: 4, 1, 32, 256>}, {transform_indices = @transform_3, window_bounds = array<i64: 4, 1, 32, 256>}, {transform_indices = @transform_4, window_bounds = array<i64: 4, 1, 32, 256>}, {transform_indices = @transform_5, window_bounds = array<i64: 4, 1, 32, 256>}]} {
    %c0 = arith.constant 0 : index
    %c0_0 = arith.constant 0 : index
    %c0_1 = arith.constant 0 : index
    %0 = vector.load %arg2[%c0, %c0_0, %c0_1] : memref<3x32x32xbf16, #tpu.memory_space<vmem>>, vector<1x32x32xbf16>
    %1 = vector.shape_cast %0 : vector<1x32x32xbf16> to vector<32x32xbf16>
    %c1 = arith.constant 1 : index
    %c0_2 = arith.constant 0 : index
    %c0_3 = arith.constant 0 : index
    %2 = vector.load %arg2[%c1, %c0_2, %c0_3] : memref<3x32x32xbf16, #tpu.memory_space<vmem>>, vector<1x32x32xbf16>
    %3 = vector.shape_cast %2 : vector<1x32x32xbf16> to vector<32x32xbf16>
    %c2 = arith.constant 2 : index
    %c0_4 = arith.constant 0 : index
    %c0_5 = arith.constant 0 : index
    %4 = vector.load %arg2[%c2, %c0_4, %c0_5] : memref<3x32x32xbf16, #tpu.memory_space<vmem>>, vector<1x32x32xbf16>
    %5 = vector.shape_cast %4 : vector<1x32x32xbf16> to vector<32x32xbf16>
    %c0_6 = arith.constant 0 : index
    %c0_7 = arith.constant 0 : index
    %c0_8 = arith.constant 0 : index
    %6 = vector.load %arg3[%c0_6, %c0_7, %c0_8] : memref<3x32x1xf32, #tpu.memory_space<vmem>>, vector<1x32x1xf32>
    %7 = vector.shape_cast %6 : vector<1x32x1xf32> to vector<32x1xf32>
    %c1_9 = arith.constant 1 : index
    %c0_10 = arith.constant 0 : index
    %c0_11 = arith.constant 0 : index
    %8 = vector.load %arg3[%c1_9, %c0_10, %c0_11] : memref<3x32x1xf32, #tpu.memory_space<vmem>>, vector<1x32x1xf32>
    %9 = vector.shape_cast %8 : vector<1x32x1xf32> to vector<32x1xf32>
    %c2_12 = arith.constant 2 : index
    %c0_13 = arith.constant 0 : index
    %c0_14 = arith.constant 0 : index
    %10 = vector.load %arg3[%c2_12, %c0_13, %c0_14] : memref<3x32x1xf32, #tpu.memory_space<vmem>>, vector<1x32x1xf32>
    %11 = vector.shape_cast %10 : vector<1x32x1xf32> to vector<32x1xf32>
    %c0_15 = arith.constant 0 : index
    %c0_16 = arith.constant 0 : index
    %c0_17 = arith.constant 0 : index
    %c0_18 = arith.constant 0 : index
    %12 = vector.load %arg4[%c0_15, %c0_16, %c0_17, %c0_18] : memref<4x1x32x256xbf16, #tpu.memory_space<vmem>>, vector<1x1x32x256xbf16>
    %13 = vector.shape_cast %12 : vector<1x1x32x256xbf16> to vector<32x256xbf16>
    %cst = arith.constant dense<0.000000e+00> : vector<32x256xf32>
    %14 = tpu.matmul %1, %13, %cst {dimension_numbers = #tpu.dot_dimension_numbers<[1], [0], [0], [1], [0, 0, 1, 1], [], []>} : vector<32x32xbf16>, vector<32x256xbf16>, vector<32x256xf32> -> vector<32x256xf32>
    %15 = vector.broadcast %7 : vector<32x1xf32> to vector<32x256xf32>
    %16 = arith.addf %14, %15 : vector<32x256xf32>
    %cst_19 = arith.constant 5.000000e-01 : f32
    %17 = vector.broadcast %cst_19 : f32 to vector<32x256xf32>
    %18 = arith.cmpf ogt, %16, %17 : vector<32x256xf32>
    %19 = arith.extui %18 : vector<32x256xi1> to vector<32x256xi32>
    %20 = arith.sitofp %19 : vector<32x256xi32> to vector<32x256xf32>
    %21 = arith.truncf %20 : vector<32x256xf32> to vector<32x256xbf16>
    %c0_20 = arith.constant 0 : index
    %c0_21 = arith.constant 0 : index
    %c0_22 = arith.constant 0 : index
    %c0_23 = arith.constant 0 : index
    %22 = vector.load %arg5[%c0_20, %c0_21, %c0_22, %c0_23] : memref<4x1x32x256xbf16, #tpu.memory_space<vmem>>, vector<1x1x32x256xbf16>
    %23 = vector.shape_cast %22 : vector<1x1x32x256xbf16> to vector<32x256xbf16>
    %24 = vector.shape_cast %21 : vector<32x256xbf16> to vector<1x1x32x256xbf16>
    tpu.vector_store %arg5[%c0_20, %c0_21, %c0_22, %c0_23], %24 {strides = array<i32>} : memref<4x1x32x256xbf16, #tpu.memory_space<vmem>>, vector<1x1x32x256xbf16>,
    %cst_24 = arith.constant dense<0.000000e+00> : vector<32x256xf32>
    %25 = tpu.matmul %3, %13, %cst_24 {dimension_numbers = #tpu.dot_dimension_numbers<[1], [0], [0], [1], [0, 0, 1, 1], [], []>} : vector<32x32xbf16>, vector<32x256xbf16>, vector<32x256xf32> -> vector<32x256xf32>
    %26 = vector.broadcast %9 : vector<32x1xf32> to vector<32x256xf32>
    %27 = arith.addf %25, %26 : vector<32x256xf32>
    %cst_25 = arith.constant 5.000000e-01 : f32
    %28 = vector.broadcast %cst_25 : f32 to vector<32x256xf32>
    %29 = arith.cmpf ogt, %27, %28 : vector<32x256xf32>
    %30 = arith.extui %29 : vector<32x256xi1> to vector<32x256xi32>
    %31 = arith.sitofp %30 : vector<32x256xi32> to vector<32x256xf32>
    %32 = arith.truncf %31 : vector<32x256xf32> to vector<32x256xbf16>
    %c0_26 = arith.constant 0 : index
    %c0_27 = arith.constant 0 : index
    %c0_28 = arith.constant 0 : index
    %c0_29 = arith.constant 0 : index
    %33 = vector.load %arg6[%c0_26, %c0_27, %c0_28, %c0_29] : memref<4x1x32x256xbf16, #tpu.memory_space<vmem>>, vector<1x1x32x256xbf16>
    %34 = vector.shape_cast %33 : vector<1x1x32x256xbf16> to vector<32x256xbf16>
    %35 = vector.shape_cast %32 : vector<32x256xbf16> to vector<1x1x32x256xbf16>
    tpu.vector_store %arg6[%c0_26, %c0_27, %c0_28, %c0_29], %35 {strides = array<i32>} : memref<4x1x32x256xbf16, #tpu.memory_space<vmem>>, vector<1x1x32x256xbf16>,
    %cst_30 = arith.constant dense<0.000000e+00> : vector<32x256xf32>
    %36 = tpu.matmul %5, %13, %cst_30 {dimension_numbers = #tpu.dot_dimension_numbers<[1], [0], [0], [1], [0, 0, 1, 1], [], []>} : vector<32x32xbf16>, vector<32x256xbf16>, vector<32x256xf32> -> vector<32x256xf32>
    %37 = vector.broadcast %11 : vector<32x1xf32> to vector<32x256xf32>
    %38 = arith.addf %36, %37 : vector<32x256xf32>
    %cst_31 = arith.constant 5.000000e-01 : f32
    %39 = vector.broadcast %cst_31 : f32 to vector<32x256xf32>
    %40 = arith.cmpf ogt, %38, %39 : vector<32x256xf32>
    %41 = arith.extui %40 : vector<32x256xi1> to vector<32x256xi32>
    %42 = arith.sitofp %41 : vector<32x256xi32> to vector<32x256xf32>
    %43 = arith.truncf %42 : vector<32x256xf32> to vector<32x256xbf16>
    %c0_32 = arith.constant 0 : index
    %c0_33 = arith.constant 0 : index
    %c0_34 = arith.constant 0 : index
    %c0_35 = arith.constant 0 : index
    %44 = vector.load %arg7[%c0_32, %c0_33, %c0_34, %c0_35] : memref<4x1x32x256xbf16, #tpu.memory_space<vmem>>, vector<1x1x32x256xbf16>
    %45 = vector.shape_cast %44 : vector<1x1x32x256xbf16> to vector<32x256xbf16>
    %46 = vector.shape_cast %43 : vector<32x256xbf16> to vector<1x1x32x256xbf16>
    tpu.vector_store %arg7[%c0_32, %c0_33, %c0_34, %c0_35], %46 {strides = array<i32>} : memref<4x1x32x256xbf16, #tpu.memory_space<vmem>>, vector<1x1x32x256xbf16>,
    %c1_36 = arith.constant 1 : index
    %c0_37 = arith.constant 0 : index
    %c0_38 = arith.constant 0 : index
    %c0_39 = arith.constant 0 : index
    %47 = vector.load %arg4[%c1_36, %c0_37, %c0_38, %c0_39] : memref<4x1x32x256xbf16, #tpu.memory_space<vmem>>, vector<1x1x32x256xbf16>
    %48 = vector.shape_cast %47 : vector<1x1x32x256xbf16> to vector<32x256xbf16>
    %cst_40 = arith.constant dense<0.000000e+00> : vector<32x256xf32>
    %49 = tpu.matmul %1, %48, %cst_40 {dimension_numbers = #tpu.dot_dimension_numbers<[1], [0], [0], [1], [0, 0, 1, 1], [], []>} : vector<32x32xbf16>, vector<32x256xbf16>, vector<32x256xf32> -> vector<32x256xf32>
    %50 = vector.broadcast %7 : vector<32x1xf32> to vector<32x256xf32>
    %51 = arith.addf %49, %50 : vector<32x256xf32>
    %cst_41 = arith.constant 2.500000e-01 : f32
    %52 = vector.broadcast %cst_41 : f32 to vector<32x256xf32>
    %53 = arith.mulf %16, %52 : vector<32x256xf32>
    %54 = arith.addf %53, %51 : vector<32x256xf32>
    %55 = arith.select %18, %51, %54 : vector<32x256xi1>, vector<32x256xf32>
    %cst_42 = arith.constant 5.000000e-01 : f32
    %56 = vector.broadcast %cst_42 : f32 to vector<32x256xf32>
    %57 = arith.cmpf ogt, %55, %56 : vector<32x256xf32>
    %58 = arith.extui %57 : vector<32x256xi1> to vector<32x256xi32>
    %59 = arith.sitofp %58 : vector<32x256xi32> to vector<32x256xf32>
    %60 = arith.truncf %59 : vector<32x256xf32> to vector<32x256xbf16>
    %c1_43 = arith.constant 1 : index
    %c0_44 = arith.constant 0 : index
    %c0_45 = arith.constant 0 : index
    %c0_46 = arith.constant 0 : index
    %61 = vector.load %arg5[%c1_43, %c0_44, %c0_45, %c0_46] : memref<4x1x32x256xbf16, #tpu.memory_space<vmem>>, vector<1x1x32x256xbf16>
    %62 = vector.shape_cast %61 : vector<1x1x32x256xbf16> to vector<32x256xbf16>
    %63 = vector.shape_cast %60 : vector<32x256xbf16> to vector<1x1x32x256xbf16>
    tpu.vector_store %arg5[%c1_43, %c0_44, %c0_45, %c0_46], %63 {strides = array<i32>} : memref<4x1x32x256xbf16, #tpu.memory_space<vmem>>, vector<1x1x32x256xbf16>,
    %cst_47 = arith.constant dense<0.000000e+00> : vector<32x256xf32>
    %64 = tpu.matmul %3, %48, %cst_47 {dimension_numbers = #tpu.dot_dimension_numbers<[1], [0], [0], [1], [0, 0, 1, 1], [], []>} : vector<32x32xbf16>, vector<32x256xbf16>, vector<32x256xf32> -> vector<32x256xf32>
    %65 = vector.broadcast %9 : vector<32x1xf32> to vector<32x256xf32>
    %66 = arith.addf %64, %65 : vector<32x256xf32>
    %cst_48 = arith.constant 2.500000e-01 : f32
    %67 = vector.broadcast %cst_48 : f32 to vector<32x256xf32>
    %68 = arith.mulf %27, %67 : vector<32x256xf32>
    %69 = arith.addf %68, %66 : vector<32x256xf32>
    %70 = arith.select %29, %66, %69 : vector<32x256xi1>, vector<32x256xf32>
    %cst_49 = arith.constant 5.000000e-01 : f32
    %71 = vector.broadcast %cst_49 : f32 to vector<32x256xf32>
    %72 = arith.cmpf ogt, %70, %71 : vector<32x256xf32>
    %73 = arith.extui %72 : vector<32x256xi1> to vector<32x256xi32>
    %74 = arith.sitofp %73 : vector<32x256xi32> to vector<32x256xf32>
    %75 = arith.truncf %74 : vector<32x256xf32> to vector<32x256xbf16>
    %c1_50 = arith.constant 1 : index
    %c0_51 = arith.constant 0 : index
    %c0_52 = arith.constant 0 : index
    %c0_53 = arith.constant 0 : index
    %76 = vector.load %arg6[%c1_50, %c0_51, %c0_52, %c0_53] : memref<4x1x32x256xbf16, #tpu.memory_space<vmem>>, vector<1x1x32x256xbf16>
    %77 = vector.shape_cast %76 : vector<1x1x32x256xbf16> to vector<32x256xbf16>
    %78 = vector.shape_cast %75 : vector<32x256xbf16> to vector<1x1x32x256xbf16>
    tpu.vector_store %arg6[%c1_50, %c0_51, %c0_52, %c0_53], %78 {strides = array<i32>} : memref<4x1x32x256xbf16, #tpu.memory_space<vmem>>, vector<1x1x32x256xbf16>,
    %cst_54 = arith.constant dense<0.000000e+00> : vector<32x256xf32>
    %79 = tpu.matmul %5, %48, %cst_54 {dimension_numbers = #tpu.dot_dimension_numbers<[1], [0], [0], [1], [0, 0, 1, 1], [], []>} : vector<32x32xbf16>, vector<32x256xbf16>, vector<32x256xf32> -> vector<32x256xf32>
    %80 = vector.broadcast %11 : vector<32x1xf32> to vector<32x256xf32>
    %81 = arith.addf %79, %80 : vector<32x256xf32>
    %cst_55 = arith.constant 2.500000e-01 : f32
    %82 = vector.broadcast %cst_55 : f32 to vector<32x256xf32>
    %83 = arith.mulf %38, %82 : vector<32x256xf32>
    %84 = arith.addf %83, %81 : vector<32x256xf32>
    %85 = arith.select %40, %81, %84 : vector<32x256xi1>, vector<32x256xf32>
    %cst_56 = arith.constant 5.000000e-01 : f32
    %86 = vector.broadcast %cst_56 : f32 to vector<32x256xf32>
    %87 = arith.cmpf ogt, %85, %86 : vector<32x256xf32>
    %88 = arith.extui %87 : vector<32x256xi1> to vector<32x256xi32>
    %89 = arith.sitofp %88 : vector<32x256xi32> to vector<32x256xf32>
    %90 = arith.truncf %89 : vector<32x256xf32> to vector<32x256xbf16>
    %c1_57 = arith.constant 1 : index
    %c0_58 = arith.constant 0 : index
    %c0_59 = arith.constant 0 : index
    %c0_60 = arith.constant 0 : index
    %91 = vector.load %arg7[%c1_57, %c0_58, %c0_59, %c0_60] : memref<4x1x32x256xbf16, #tpu.memory_space<vmem>>, vector<1x1x32x256xbf16>
    %92 = vector.shape_cast %91 : vector<1x1x32x256xbf16> to vector<32x256xbf16>
    %93 = vector.shape_cast %90 : vector<32x256xbf16> to vector<1x1x32x256xbf16>
    tpu.vector_store %arg7[%c1_57, %c0_58, %c0_59, %c0_60], %93 {strides = array<i32>} : memref<4x1x32x256xbf16, #tpu.memory_space<vmem>>, vector<1x1x32x256xbf16>,
    %c2_61 = arith.constant 2 : index
    %c0_62 = arith.constant 0 : index
    %c0_63 = arith.constant 0 : index
    %c0_64 = arith.constant 0 : index
    %94 = vector.load %arg4[%c2_61, %c0_62, %c0_63, %c0_64] : memref<4x1x32x256xbf16, #tpu.memory_space<vmem>>, vector<1x1x32x256xbf16>
    %95 = vector.shape_cast %94 : vector<1x1x32x256xbf16> to vector<32x256xbf16>
    %cst_65 = arith.constant dense<0.000000e+00> : vector<32x256xf32>
    %96 = tpu.matmul %1, %95, %cst_65 {dimension_numbers = #tpu.dot_dimension_numbers<[1], [0], [0], [1], [0, 0, 1, 1], [], []>} : vector<32x32xbf16>, vector<32x256xbf16>, vector<32x256xf32> -> vector<32x256xf32>
    %97 = vector.broadcast %7 : vector<32x1xf32> to vector<32x256xf32>
    %98 = arith.addf %96, %97 : vector<32x256xf32>
    %cst_66 = arith.constant 2.500000e-01 : f32
    %99 = vector.broadcast %cst_66 : f32 to vector<32x256xf32>
    %100 = arith.mulf %55, %99 : vector<32x256xf32>
    %101 = arith.addf %100, %98 : vector<32x256xf32>
    %102 = arith.select %57, %98, %101 : vector<32x256xi1>, vector<32x256xf32>
    %cst_67 = arith.constant 5.000000e-01 : f32
    %103 = vector.broadcast %cst_67 : f32 to vector<32x256xf32>
    %104 = arith.cmpf ogt, %102, %103 : vector<32x256xf32>
    %105 = arith.extui %104 : vector<32x256xi1> to vector<32x256xi32>
    %106 = arith.sitofp %105 : vector<32x256xi32> to vector<32x256xf32>
    %107 = arith.truncf %106 : vector<32x256xf32> to vector<32x256xbf16>
    %c2_68 = arith.constant 2 : index
    %c0_69 = arith.constant 0 : index
    %c0_70 = arith.constant 0 : index
    %c0_71 = arith.constant 0 : index
    %108 = vector.load %arg5[%c2_68, %c0_69, %c0_70, %c0_71] : memref<4x1x32x256xbf16, #tpu.memory_space<vmem>>, vector<1x1x32x256xbf16>
    %109 = vector.shape_cast %108 : vector<1x1x32x256xbf16> to vector<32x256xbf16>
    %110 = vector.shape_cast %107 : vector<32x256xbf16> to vector<1x1x32x256xbf16>
    tpu.vector_store %arg5[%c2_68, %c0_69, %c0_70, %c0_71], %110 {strides = array<i32>} : memref<4x1x32x256xbf16, #tpu.memory_space<vmem>>, vector<1x1x32x256xbf16>,
    %cst_72 = arith.constant dense<0.000000e+00> : vector<32x256xf32>
    %111 = tpu.matmul %3, %95, %cst_72 {dimension_numbers = #tpu.dot_dimension_numbers<[1], [0], [0], [1], [0, 0, 1, 1], [], []>} : vector<32x32xbf16>, vector<32x256xbf16>, vector<32x256xf32> -> vector<32x256xf32>
    %112 = vector.broadcast %9 : vector<32x1xf32> to vector<32x256xf32>
    %113 = arith.addf %111, %112 : vector<32x256xf32>
    %cst_73 = arith.constant 2.500000e-01 : f32
    %114 = vector.broadcast %cst_73 : f32 to vector<32x256xf32>
    %115 = arith.mulf %70, %114 : vector<32x256xf32>
    %116 = arith.addf %115, %113 : vector<32x256xf32>
    %117 = arith.select %72, %113, %116 : vector<32x256xi1>, vector<32x256xf32>
    %cst_74 = arith.constant 5.000000e-01 : f32
    %118 = vector.broadcast %cst_74 : f32 to vector<32x256xf32>
    %119 = arith.cmpf ogt, %117, %118 : vector<32x256xf32>
    %120 = arith.extui %119 : vector<32x256xi1> to vector<32x256xi32>
    %121 = arith.sitofp %120 : vector<32x256xi32> to vector<32x256xf32>
    %122 = arith.truncf %121 : vector<32x256xf32> to vector<32x256xbf16>
    %c2_75 = arith.constant 2 : index
    %c0_76 = arith.constant 0 : index
    %c0_77 = arith.constant 0 : index
    %c0_78 = arith.constant 0 : index
    %123 = vector.load %arg6[%c2_75, %c0_76, %c0_77, %c0_78] : memref<4x1x32x256xbf16, #tpu.memory_space<vmem>>, vector<1x1x32x256xbf16>
    %124 = vector.shape_cast %123 : vector<1x1x32x256xbf16> to vector<32x256xbf16>
    %125 = vector.shape_cast %122 : vector<32x256xbf16> to vector<1x1x32x256xbf16>
    tpu.vector_store %arg6[%c2_75, %c0_76, %c0_77, %c0_78], %125 {strides = array<i32>} : memref<4x1x32x256xbf16, #tpu.memory_space<vmem>>, vector<1x1x32x256xbf16>,
    %cst_79 = arith.constant dense<0.000000e+00> : vector<32x256xf32>
    %126 = tpu.matmul %5, %95, %cst_79 {dimension_numbers = #tpu.dot_dimension_numbers<[1], [0], [0], [1], [0, 0, 1, 1], [], []>} : vector<32x32xbf16>, vector<32x256xbf16>, vector<32x256xf32> -> vector<32x256xf32>
    %127 = vector.broadcast %11 : vector<32x1xf32> to vector<32x256xf32>
    %128 = arith.addf %126, %127 : vector<32x256xf32>
    %cst_80 = arith.constant 2.500000e-01 : f32
    %129 = vector.broadcast %cst_80 : f32 to vector<32x256xf32>
    %130 = arith.mulf %85, %129 : vector<32x256xf32>
    %131 = arith.addf %130, %128 : vector<32x256xf32>
    %132 = arith.select %87, %128, %131 : vector<32x256xi1>, vector<32x256xf32>
    %cst_81 = arith.constant 5.000000e-01 : f32
    %133 = vector.broadcast %cst_81 : f32 to vector<32x256xf32>
    %134 = arith.cmpf ogt, %132, %133 : vector<32x256xf32>
    %135 = arith.extui %134 : vector<32x256xi1> to vector<32x256xi32>
    %136 = arith.sitofp %135 : vector<32x256xi32> to vector<32x256xf32>
    %137 = arith.truncf %136 : vector<32x256xf32> to vector<32x256xbf16>
    %c2_82 = arith.constant 2 : index
    %c0_83 = arith.constant 0 : index
    %c0_84 = arith.constant 0 : index
    %c0_85 = arith.constant 0 : index
    %138 = vector.load %arg7[%c2_82, %c0_83, %c0_84, %c0_85] : memref<4x1x32x256xbf16, #tpu.memory_space<vmem>>, vector<1x1x32x256xbf16>
    %139 = vector.shape_cast %138 : vector<1x1x32x256xbf16> to vector<32x256xbf16>
    %140 = vector.shape_cast %137 : vector<32x256xbf16> to vector<1x1x32x256xbf16>
    tpu.vector_store %arg7[%c2_82, %c0_83, %c0_84, %c0_85], %140 {strides = array<i32>} : memref<4x1x32x256xbf16, #tpu.memory_space<vmem>>, vector<1x1x32x256xbf16>,
    %c3 = arith.constant 3 : index
    %c0_86 = arith.constant 0 : index
    %c0_87 = arith.constant 0 : index
    %c0_88 = arith.constant 0 : index
    %141 = vector.load %arg4[%c3, %c0_86, %c0_87, %c0_88] : memref<4x1x32x256xbf16, #tpu.memory_space<vmem>>, vector<1x1x32x256xbf16>
    %142 = vector.shape_cast %141 : vector<1x1x32x256xbf16> to vector<32x256xbf16>
    %cst_89 = arith.constant dense<0.000000e+00> : vector<32x256xf32>
    %143 = tpu.matmul %1, %142, %cst_89 {dimension_numbers = #tpu.dot_dimension_numbers<[1], [0], [0], [1], [0, 0, 1, 1], [], []>} : vector<32x32xbf16>, vector<32x256xbf16>, vector<32x256xf32> -> vector<32x256xf32>
    %144 = vector.broadcast %7 : vector<32x1xf32> to vector<32x256xf32>
    %145 = arith.addf %143, %144 : vector<32x256xf32>
    %cst_90 = arith.constant 2.500000e-01 : f32
    %146 = vector.broadcast %cst_90 : f32 to vector<32x256xf32>
    %147 = arith.mulf %102, %146 : vector<32x256xf32>
    %148 = arith.addf %147, %145 : vector<32x256xf32>
    %149 = arith.select %104, %145, %148 : vector<32x256xi1>, vector<32x256xf32>
    %cst_91 = arith.constant 5.000000e-01 : f32
    %150 = vector.broadcast %cst_91 : f32 to vector<32x256xf32>
    %151 = arith.cmpf ogt, %149, %150 : vector<32x256xf32>
    %152 = arith.extui %151 : vector<32x256xi1> to vector<32x256xi32>
    %153 = arith.sitofp %152 : vector<32x256xi32> to vector<32x256xf32>
    %154 = arith.truncf %153 : vector<32x256xf32> to vector<32x256xbf16>
    %c3_92 = arith.constant 3 : index
    %c0_93 = arith.constant 0 : index
    %c0_94 = arith.constant 0 : index
    %c0_95 = arith.constant 0 : index
    %155 = vector.load %arg5[%c3_92, %c0_93, %c0_94, %c0_95] : memref<4x1x32x256xbf16, #tpu.memory_space<vmem>>, vector<1x1x32x256xbf16>
    %156 = vector.shape_cast %155 : vector<1x1x32x256xbf16> to vector<32x256xbf16>
    %157 = vector.shape_cast %154 : vector<32x256xbf16> to vector<1x1x32x256xbf16>
    tpu.vector_store %arg5[%c3_92, %c0_93, %c0_94, %c0_95], %157 {strides = array<i32>} : memref<4x1x32x256xbf16, #tpu.memory_space<vmem>>, vector<1x1x32x256xbf16>,
    %cst_96 = arith.constant dense<0.000000e+00> : vector<32x256xf32>
    %158 = tpu.matmul %3, %142, %cst_96 {dimension_numbers = #tpu.dot_dimension_numbers<[1], [0], [0], [1], [0, 0, 1, 1], [], []>} : vector<32x32xbf16>, vector<32x256xbf16>, vector<32x256xf32> -> vector<32x256xf32>
    %159 = vector.broadcast %9 : vector<32x1xf32> to vector<32x256xf32>
    %160 = arith.addf %158, %159 : vector<32x256xf32>
    %cst_97 = arith.constant 2.500000e-01 : f32
    %161 = vector.broadcast %cst_97 : f32 to vector<32x256xf32>
    %162 = arith.mulf %117, %161 : vector<32x256xf32>
    %163 = arith.addf %162, %160 : vector<32x256xf32>
    %164 = arith.select %119, %160, %163 : vector<32x256xi1>, vector<32x256xf32>
    %cst_98 = arith.constant 5.000000e-01 : f32
    %165 = vector.broadcast %cst_98 : f32 to vector<32x256xf32>
    %166 = arith.cmpf ogt, %164, %165 : vector<32x256xf32>
    %167 = arith.extui %166 : vector<32x256xi1> to vector<32x256xi32>
    %168 = arith.sitofp %167 : vector<32x256xi32> to vector<32x256xf32>
    %169 = arith.truncf %168 : vector<32x256xf32> to vector<32x256xbf16>
    %c3_99 = arith.constant 3 : index
    %c0_100 = arith.constant 0 : index
    %c0_101 = arith.constant 0 : index
    %c0_102 = arith.constant 0 : index
    %170 = vector.load %arg6[%c3_99, %c0_100, %c0_101, %c0_102] : memref<4x1x32x256xbf16, #tpu.memory_space<vmem>>, vector<1x1x32x256xbf16>
    %171 = vector.shape_cast %170 : vector<1x1x32x256xbf16> to vector<32x256xbf16>
    %172 = vector.shape_cast %169 : vector<32x256xbf16> to vector<1x1x32x256xbf16>
    tpu.vector_store %arg6[%c3_99, %c0_100, %c0_101, %c0_102], %172 {strides = array<i32>} : memref<4x1x32x256xbf16, #tpu.memory_space<vmem>>, vector<1x1x32x256xbf16>,
    %cst_103 = arith.constant dense<0.000000e+00> : vector<32x256xf32>
    %173 = tpu.matmul %5, %142, %cst_103 {dimension_numbers = #tpu.dot_dimension_numbers<[1], [0], [0], [1], [0, 0, 1, 1], [], []>} : vector<32x32xbf16>, vector<32x256xbf16>, vector<32x256xf32> -> vector<32x256xf32>
    %174 = vector.broadcast %11 : vector<32x1xf32> to vector<32x256xf32>
    %175 = arith.addf %173, %174 : vector<32x256xf32>
    %cst_104 = arith.constant 2.500000e-01 : f32
    %176 = vector.broadcast %cst_104 : f32 to vector<32x256xf32>
    %177 = arith.mulf %132, %176 : vector<32x256xf32>
    %178 = arith.addf %177, %175 : vector<32x256xf32>
    %179 = arith.select %134, %175, %178 : vector<32x256xi1>, vector<32x256xf32>
    %cst_105 = arith.constant 5.000000e-01 : f32
    %180 = vector.broadcast %cst_105 : f32 to vector<32x256xf32>
    %181 = arith.cmpf ogt, %179, %180 : vector<32x256xf32>
    %182 = arith.extui %181 : vector<32x256xi1> to vector<32x256xi32>
    %183 = arith.sitofp %182 : vector<32x256xi32> to vector<32x256xf32>
    %184 = arith.truncf %183 : vector<32x256xf32> to vector<32x256xbf16>
    %c3_106 = arith.constant 3 : index
    %c0_107 = arith.constant 0 : index
    %c0_108 = arith.constant 0 : index
    %c0_109 = arith.constant 0 : index
    %185 = vector.load %arg7[%c3_106, %c0_107, %c0_108, %c0_109] : memref<4x1x32x256xbf16, #tpu.memory_space<vmem>>, vector<1x1x32x256xbf16>
    %186 = vector.shape_cast %185 : vector<1x1x32x256xbf16> to vector<32x256xbf16>
    %187 = vector.shape_cast %184 : vector<32x256xbf16> to vector<1x1x32x256xbf16>
    tpu.vector_store %arg7[%c3_106, %c0_107, %c0_108, %c0_109], %187 {strides = array<i32>} : memref<4x1x32x256xbf16, #tpu.memory_space<vmem>>, vector<1x1x32x256xbf16>,
    return
  }
  func.func @transform_0(%arg0: i32, %arg1: i32) -> (i32, i32, i32) {
    %c0_i32 = arith.constant 0 : i32
    %c0_i32_0 = arith.constant 0 : i32
    %c0_i32_1 = arith.constant 0 : i32
    %c0_i32_2 = arith.constant 0 : i32
    return %c0_i32, %c0_i32_0, %c0_i32_1 : i32, i32, i32
  }
  func.func @transform_1(%arg0: i32, %arg1: i32) -> (i32, i32, i32) {
    %c0_i32 = arith.constant 0 : i32
    %c0_i32_0 = arith.constant 0 : i32
    %c0_i32_1 = arith.constant 0 : i32
    %c0_i32_2 = arith.constant 0 : i32
    return %c0_i32, %c0_i32_0, %c0_i32_1 : i32, i32, i32
  }
  func.func @transform_2(%arg0: i32, %arg1: i32) -> (i32, i32, i32, i32) {
    %c0_i32 = arith.constant 0 : i32
    %c0_i32_0 = arith.constant 0 : i32
    %c0_i32_1 = arith.constant 0 : i32
    return %c0_i32, %arg0, %c0_i32_0, %arg1 : i32, i32, i32, i32
  }
  func.func @transform_3(%arg0: i32, %arg1: i32) -> (i32, i32, i32, i32) {
    %c0_i32 = arith.constant 0 : i32
    %c0_i32_0 = arith.constant 0 : i32
    %c0_i32_1 = arith.constant 0 : i32
    return %c0_i32, %arg0, %c0_i32_0, %arg1 : i32, i32, i32, i32
  }
  func.func @transform_4(%arg0: i32, %arg1: i32) -> (i32, i32, i32, i32) {
    %c0_i32 = arith.constant 0 : i32
    %c0_i32_0 = arith.constant 0 : i32
    %c0_i32_1 = arith.constant 0 : i32
    return %c0_i32, %arg0, %c0_i32_0, %arg1 : i32, i32, i32, i32
  }
  func.func @transform_5(%arg0: i32, %arg1: i32) -> (i32, i32, i32, i32) {
    %c0_i32 = arith.constant 0 : i32
    %c0_i32_0 = arith.constant 0 : i32
    %c0_i32_1 = arith.constant 0 : i32
    return %c0_i32, %arg0, %c0_i32_0, %arg1 : i32, i32, i32, i32
  }
}

</mosaic_0001>

<llo_original>
// kernel: tpu_custom_call.1
$region0: #{tpu_custom_call.1}
  #allocation0 [shape = 'u32[]', space=smem, size = 0x4, offset = 0x4, fixed_abs, tag = 'smem constant byte address 0x4 - core index']
  #allocation1 [shape = 'u32[144,128]{1,0:T(1,128)}', space=vmem, size = 0x12000, scoped, tag = 'internal scratch']
  #allocation9 [shape = 's32[]', space=sflag, size = 0x4, offset = 0, fixed_abs, tag = 'sflag constant byte address 0x0 - dummy sync flag']
  #allocation11 [shape = 's32[]', space=sflag, size = 0x4, offset = 0, fixed_abs, tag = 'sflag constant byte address 0x0 - dummy sync flag']
  #allocation13 [shape = 's32[]', space=sflag, size = 0x4, offset = 0, fixed_abs, tag = 'sflag constant byte address 0x0 - dummy sync flag']
  #allocation15 [shape = 's32[]', space=sflag, size = 0x4, offset = 0, fixed_abs, tag = 'sflag constant byte address 0x0 - dummy sync flag']
  %s0 = inlined_call_operand.vmem [shape: bf16[3,32,32], index: 0, kind: input, shape index: {}]
  %s1 = inlined_call_operand.vmem [shape: f32[3,32,1], index: 1, kind: input, shape index: {}]
  %s2 = inlined_call_operand.hbm [shape: bf16[4,2,32,256], index: 2, kind: input, shape index: {}]
  %s3 = inlined_call_operand.hbm [shape: bf16[4,2,32,256], index: 3, kind: output, shape index: {0}]
  %s4 = inlined_call_operand.hbm [shape: bf16[4,2,32,256], index: 4, kind: output, shape index: {1}]
  %s5 = inlined_call_operand.hbm [shape: bf16[4,2,32,256], index: 5, kind: output, shape index: {2}]
  %6 = xla_tuple %s3, %s4, %s5
  %s7 = sld [smem:[#allocation0]]
  $region65: #{tpu_custom_call.1} parent=0
    _
  %s9 = ssub.s32 1, %s7
  %s10 = scalar_select 0, %s9, %s7
  $region1: #{tpu_custom_call.1} parent=0
    #allocation2 [shape = 'u8[131072]{0}', space=vmem, size = 0x20000, scoped, tag = 'input window, operand 2']
    #allocation3 [shape = 's32[2]{0}', space=sflag, size = 0x8, scoped, tag = 'scoped memory for tpu_custom_call.1']
    #allocation4 [shape = 's32[2]{0}', space=sflag, size = 0x8, scoped, tag = 'scoped memory for tpu_custom_call.1']
    #allocation5 [shape = 'u8[131072]{0}', space=vmem, size = 0x20000, scoped, tag = 'output window, operand 0']
    #allocation6 [shape = 'u8[131072]{0}', space=vmem, size = 0x20000, scoped, tag = 'output window, operand 1']
    #allocation7 [shape = 's32[2]{0}', space=sflag, size = 0x8, scoped, tag = 'scoped memory for tpu_custom_call.1']
    #allocation8 [shape = 'u8[131072]{0}', space=vmem, size = 0x20000, scoped, tag = 'output window, operand 2']
    %11 = vsyncpa [#allocation3], 0
    %s12 = scalar_lea.sflag [#allocation3], 1
    %13 = vsyncpa %s12, 0
    %14 = vsyncpa [#allocation4], 0
    %s15 = scalar_lea.sflag [#allocation4], 1
    %16 = vsyncpa %s15, 0
    %17 = vsyncpa [#allocation7], 0
    %s18 = scalar_lea.sflag [#allocation7], 1
    %19 = vsyncpa %s18, 0
    loop: start=0, step=1, limit=4
    $region2: #{tpu_custom_call.1} parent=1 // loop_pre_header
      _
    $region3: #{tpu_custom_call.1} parent=1 // loop_header
      %s21 = sphi 0, %s25
      %p22 = scmp.ge.s32.totalorder %s21, 4
      %s28 = sphi 0, %s40
      %s29 = sphi 0, %s36
      %s30 = sphi 0, %s28
      %s31 = sphi 0, %s29
      %s32 = sphi 0, %s30
      %s33 = sphi 0, %s31
      %s41 = sphi 0, %s41
      %s43 = sphi 0, %s41
      %s44 = sphi 0, %s43
      %s58 = sphi 0, %s44
      %s62 = sphi 0, %s62
      %s64 = sphi 0, %s62
      %s65 = sphi 0, %s64
      %s79 = sphi 0, %s65
      %s87 = sphi 0, %s89
      %s90 = sphi 0, %s87
      %s91 = sphi 0, %s90
      %s107 = sphi 0, %s91
      %s115 = sphi 0, %s117
      %s118 = sphi 0, %s115
      %s119 = sphi 0, %s118
      %s135 = sphi 0, %s119
      %s143 = sphi 0, %s145
      %s146 = sphi 0, %s143
      %s147 = sphi 0, %s146
      %s163 = sphi 0, %s147
      %s171 = sphi 0, %s173
      %s174 = sphi 0, %s171
      %s175 = sphi 0, %s174
      %s191 = sphi 0, %s175
    $region4: #{tpu_custom_call.1} parent=1 // loop_header_branch
      %24 = sbr.rel (%p22) target = $region8
    $region5: #{tpu_custom_call.1} parent=1 // loop_body
      %s26 = ssub.s32 %s21, 1
      %s27 = ssub.s32 %s21, 2
      %s34 = sadd.s32 1, %s29
      %p35 = scmp.ge.s32.totalorder %s34, 1
      %s36 = scalar_select %p35, 0, %s34
      %s37 = sadd.s32 1, %s28
      %s38 = scalar_select %p35, %s37, %s28
      %p39 = scmp.ge.s32.totalorder %s38, 2
      %s40 = scalar_select %p39, 0, %s38
      %s42 = sadd.s32 %s41, 1
      %p45 = scmp.eq.s32.totalorder %s21, 1
      %p46 = scmp.ne.s32.totalorder %s41, %s43
      %p47 = scmp.eq.s32.totalorder %s21, 0
      %p48 = por %p46, %p47
      %p49 = scmp.ne.s32.totalorder %s41, %s43
      %p50 = scmp.eq.s32.totalorder %s26, 1
      %p51 = por %p49, %p50
      %p52 = scmp.ne.s32.totalorder %s43, %s44
      %p53 = scmp.eq.s32.totalorder %s26, 0
      %p54 = por %p52, %p53
      %p55 = scmp.ne.s32.totalorder %s43, %s44
      %p56 = scmp.eq.s32.totalorder %s27, 1
      %p57 = por %p55, %p56
      %p59 = scmp.ne.s32.totalorder %s44, %s58
      %p60 = scmp.eq.s32.totalorder %s27, 0
      %p61 = por %p59, %p60
      %s63 = sadd.s32 %s62, 1
      %p66 = scmp.eq.s32.totalorder %s21, 1
      %p67 = scmp.ne.s32.totalorder %s62, %s64
      %p68 = scmp.eq.s32.totalorder %s21, 0
      %p69 = por %p67, %p68
      %p70 = scmp.ne.s32.totalorder %s62, %s64
      %p71 = scmp.eq.s32.totalorder %s26, 1
      %p72 = por %p70, %p71
      %p73 = scmp.ne.s32.totalorder %s64, %s65
      %p74 = scmp.eq.s32.totalorder %s26, 0
      %p75 = por %p73, %p74
      %p76 = scmp.ne.s32.totalorder %s64, %s65
      %p77 = scmp.eq.s32.totalorder %s27, 1
      %p78 = por %p76, %p77
      %p80 = scmp.ne.s32.totalorder %s65, %s79
      %p81 = scmp.eq.s32.totalorder %s27, 0
      %p82 = por %p80, %p81
      %s83 = ssub.s32 %s28, %s40
      %s84 = ssub.s32 %s29, %s36
      %s85 = sor.u32 %s83, %s84
      %p86 = scmp.eq.s32.totalorder %s85, 0
      %s88 = sadd.s32 %s87, 1
      %s89 = scalar_select %p86, %s87, %s88
      %p92 = pneg %p86
      %p93 = scmp.eq.s32.totalorder %s21, 1
      %p94 = por %p92, %p93
      %p95 = scmp.ne.s32.totalorder %s87, %s90
      %p96 = scmp.eq.s32.totalorder %s21, 0
      %p97 = por %p95, %p96
      %p98 = scmp.ne.s32.totalorder %s87, %s90
      %p99 = scmp.eq.s32.totalorder %s26, 1
      %p100 = por %p98, %p99
      %p101 = scmp.ne.s32.totalorder %s90, %s91
      %p102 = scmp.eq.s32.totalorder %s26, 0
      %p103 = por %p101, %p102
      %p104 = scmp.ne.s32.totalorder %s90, %s91
      %p105 = scmp.eq.s32.totalorder %s27, 1
      %p106 = por %p104, %p105
      %p108 = scmp.ne.s32.totalorder %s91, %s107
      %p109 = scmp.eq.s32.totalorder %s27, 0
      %p110 = por %p108, %p109
      %s111 = ssub.s32 %s28, %s40
      %s112 = ssub.s32 %s29, %s36
      %s113 = sor.u32 %s111, %s112
      %p114 = scmp.eq.s32.totalorder %s113, 0
      %s116 = sadd.s32 %s115, 1
      %s117 = scalar_select %p114, %s115, %s116
      %p120 = pneg %p114
      %p121 = scmp.eq.s32.totalorder %s21, 1
      %p122 = por %p120, %p121
      %p123 = scmp.ne.s32.totalorder %s115, %s118
      %p124 = scmp.eq.s32.totalorder %s21, 0
      %p125 = por %p123, %p124
      %p126 = scmp.ne.s32.totalorder %s115, %s118
      %p127 = scmp.eq.s32.totalorder %s26, 1
      %p128 = por %p126, %p127
      %p129 = scmp.ne.s32.totalorder %s118, %s119
      %p130 = scmp.eq.s32.totalorder %s26, 0
      %p131 = por %p129, %p130
      %p132 = scmp.ne.s32.totalorder %s118, %s119
      %p133 = scmp.eq.s32.totalorder %s27, 1
      %p134 = por %p132, %p133
      %p136 = scmp.ne.s32.totalorder %s119, %s135
      %p137 = scmp.eq.s32.totalorder %s27, 0
      %p138 = por %p136, %p137
      %s139 = ssub.s32 %s28, %s40
      %s140 = ssub.s32 %s29, %s36
      %s141 = sor.u32 %s139, %s140
      %p142 = scmp.eq.s32.totalorder %s141, 0
      %s144 = sadd.s32 %s143, 1
      %s145 = scalar_select %p142, %s143, %s144
      %p148 = pneg %p142
      %p149 = scmp.eq.s32.totalorder %s21, 1
      %p150 = por %p148, %p149
      %p151 = scmp.ne.s32.totalorder %s143, %s146
      %p152 = scmp.eq.s32.totalorder %s21, 0
      %p153 = por %p151, %p152
      %p154 = scmp.ne.s32.totalorder %s143, %s146
      %p155 = scmp.eq.s32.totalorder %s26, 1
      %p156 = por %p154, %p155
      %p157 = scmp.ne.s32.totalorder %s146, %s147
      %p158 = scmp.eq.s32.totalorder %s26, 0
      %p159 = por %p157, %p158
      %p160 = scmp.ne.s32.totalorder %s146, %s147
      %p161 = scmp.eq.s32.totalorder %s27, 1
      %p162 = por %p160, %p161
      %p164 = scmp.ne.s32.totalorder %s147, %s163
      %p165 = scmp.eq.s32.totalorder %s27, 0
      %p166 = por %p164, %p165
      %s167 = ssub.s32 %s28, %s40
      %s168 = ssub.s32 %s29, %s36
      %s169 = sor.u32 %s167, %s168
      %p170 = scmp.eq.s32.totalorder %s169, 0
      %s172 = sadd.s32 %s171, 1
      %s173 = scalar_select %p170, %s171, %s172
      %p176 = pneg %p170
      %p177 = scmp.eq.s32.totalorder %s21, 1
      %p178 = por %p176, %p177
      %p179 = scmp.ne.s32.totalorder %s171, %s174
      %p180 = scmp.eq.s32.totalorder %s21, 0
      %p181 = por %p179, %p180
      %p182 = scmp.ne.s32.totalorder %s171, %s174
      %p183 = scmp.eq.s32.totalorder %s26, 1
      %p184 = por %p182, %p183
      %p185 = scmp.ne.s32.totalorder %s174, %s175
      %p186 = scmp.eq.s32.totalorder %s26, 0
      %p187 = por %p185, %p186
      %p188 = scmp.ne.s32.totalorder %s174, %s175
      %p189 = scmp.eq.s32.totalorder %s27, 1
      %p190 = por %p188, %p189
      %p192 = scmp.ne.s32.totalorder %s175, %s191
      %p193 = scmp.eq.s32.totalorder %s27, 0
      %p194 = por %p192, %p193
      %p195 = scmp.le.s32.totalorder 1, %s21
      %p196 = scmp.lt.s32.totalorder %s21, 3
      %p197 = pnand %p195, %p196
      %p198 = pneg %p197
      // Predicated region
      $region9: #{tpu_custom_call.1} parent=5 // pred_check
        _
      $region10: #{tpu_custom_call.1} parent=5 // pred_check_branch
        %200 = sbr.rel (%p197) target = $region12
      $region11: #{tpu_custom_call.1} parent=5 // pred_region
        %s201 = ssub.s32 %s21, 1
        // Predicated region
        $region13: #{tpu_custom_call.1} parent=11 // pred_check
          %p202 = pneg %p54
        $region14: #{tpu_custom_call.1} parent=11 // pred_check_branch
          %204 = sbr.rel (%p202) target = $region16
        $region15: #{tpu_custom_call.1} parent=11 // pred_region
          _
        $region16: #{tpu_custom_call.1} parent=11 // pred_fallthru
          _
        // Predicated region
        $region17: #{tpu_custom_call.1} parent=11 // pred_check
          %p205 = pneg %p75
        $region18: #{tpu_custom_call.1} parent=11 // pred_check_branch
          %207 = sbr.rel (%p205) target = $region20
        $region19: #{tpu_custom_call.1} parent=11 // pred_region
          _
        $region20: #{tpu_custom_call.1} parent=11 // pred_fallthru
          _
      $region12: #{tpu_custom_call.1} parent=5 // pred_fallthru
        _
      %p208 = scmp.lt.s32.totalorder %s21, 2
      // Predicated region
      $region21: #{tpu_custom_call.1} parent=5 // pred_check
        %p209 = pneg %p208
      $region22: #{tpu_custom_call.1} parent=5 // pred_check_branch
        %211 = sbr.rel (%p209) target = $region24
      $region23: #{tpu_custom_call.1} parent=5 // pred_region
        // Predicated region
        $region25: #{tpu_custom_call.1} parent=23 // pred_check
          %p212 = pneg %p97
        $region26: #{tpu_custom_call.1} parent=23 // pred_check_branch
          %214 = sbr.rel (%p212) target = $region28
        $region27: #{tpu_custom_call.1} parent=23 // pred_region
          #allocation10 [shape = 'u32[6]{0}', space=smem, size = 0x18, scoped, tag = 'DMA stride descriptor']
          %s215 = sand.u32 %s87, 1
          %s216 = scalar_lea.sflag [#allocation3], %s215
          %s217 = sand.u32 %s87, 1
          %s218 = smul.addr %s217, 128
          %s219 = scalar_lea.vmem [#allocation2], %s218
          %s220 = smul.u32 2, %s29
          %s222 = ssub.s32 2048, 2048
          %223 = vsyncadd %s216, %s222
          %s224 = smul.addr %s28, 8
          %s225 = sadd.s32 %s220, %s224
          %s226 = smul.addr %s225, 64
          %s227 = scalar_lea.hbm %s2, %s226
          %s229 = sshll.u32 1, 14
          %s230 = sxor.u32 4294967295, %s229
          %s232 = sld [smem:[#allocation0]]
          %s233 = sadd.s32 2, %s232
          %s235 = sshll.u32 7, 26
          %s236 = sxor.u32 4294967295, %s235
          %s237 = sand.u32 0, %s236
          %s238 = sshll.u32 %s233, 26
          %s239 = sor.u32 %s237, %s238
          %s240 = sshll.u32 %s219, 4
          %s241 = int_to_ptr.vmem [resolvable:$true] %s240
          %247 = sst [smem:[#allocation10]] 1024
          %s248 = scalar_lea.smem [#allocation10], 1
          %249 = sst [smem:[%s248]] 512
          %s250 = scalar_lea.smem [#allocation10], 2
          %251 = sst [smem:[%s250]] 4
          %s252 = scalar_lea.smem [#allocation10], 3
          %253 = sst [smem:[%s252]] 128
          %s254 = scalar_lea.smem [#allocation10], 4
          %255 = sst [smem:[%s254]] 128
          %s256 = scalar_lea.smem [#allocation10], 5
          %257 = sst [smem:[%s256]] 8
          %259 = dma.general %s227, 2048, %s241, %s216, [#allocation9], [#allocation10], %s239, 0
        $region28: #{tpu_custom_call.1} parent=23 // pred_fallthru
          _
      $region24: #{tpu_custom_call.1} parent=5 // pred_fallthru
        _
      %p260 = scmp.le.s32.totalorder 1, %s21
      %p261 = scmp.lt.s32.totalorder %s21, 3
      %p262 = pnand %p260, %p261
      %p263 = pneg %p262
      // Predicated region
      $region29: #{tpu_custom_call.1} parent=5 // pred_check
        _
      $region30: #{tpu_custom_call.1} parent=5 // pred_check_branch
        %265 = sbr.rel (%p262) target = $region32
      $region31: #{tpu_custom_call.1} parent=5 // pred_region
        %s266 = ssub.s32 %s21, 1
        %s267 = sand.u32 %s90, 1
        %s268 = scalar_lea.sflag [#allocation3], %s267
        %s269 = sand.u32 %s90, 1
        %s270 = smul.addr %s269, 128
        %s271 = scalar_lea.vmem [#allocation2], %s270
        // Predicated region
        $region33: #{tpu_custom_call.1} parent=31 // pred_check
          %p272 = pneg %p103
        $region34: #{tpu_custom_call.1} parent=31 // pred_check_branch
          %274 = sbr.rel (%p272) target = $region36
        $region35: #{tpu_custom_call.1} parent=31 // pred_region
          %275 = dma.done %s268, 2048
        $region36: #{tpu_custom_call.1} parent=31 // pred_fallthru
          _
        %p276 = pneg %p54
        %p277 = pneg %p51
        %p278 = pneg %p75
        %p279 = pneg %p72
        %s280 = sand.u32 %s90, 1
        %s281 = scalar_lea.sflag [#allocation3], %s280
        %s282 = sand.u32 %s90, 1
        %s283 = smul.addr %s282, 128
        %s284 = scalar_lea.vmem [#allocation2], %s283
        %p285 = pneg %p103
        %p286 = pneg %p100
        %p287 = pneg %p131
        %p288 = pneg %p128
        %s289 = sand.u32 %s118, 1
        %s290 = scalar_lea.sflag [#allocation4], %s289
        %s291 = sand.u32 %s118, 1
        %s292 = smul.addr %s291, 128
        %s293 = scalar_lea.vmem [#allocation5], %s292
        %p294 = pneg %p159
        %p295 = pneg %p156
        %s296 = sand.u32 %s26, 1
        %s297 = scalar_lea.sflag [#allocation7], %s296
        %s298 = sand.u32 %s146, 1
        %s299 = smul.addr %s298, 128
        %s300 = scalar_lea.vmem [#allocation6], %s299
        %p301 = pneg %p187
        %p302 = pneg %p184
        %s303 = sand.u32 %s26, 1
        %s304 = scalar_lea.sflag [#allocation7], %s303
        %s305 = sand.u32 %s174, 1
        %s306 = smul.addr %s305, 128
        %s307 = scalar_lea.vmem [#allocation8], %s306
        %s308 = smul.u32 2, %s31
        %s309 = smul.u32 2, %s31
        %s310 = smul.u32 2, %s31
        %s311 = smul.u32 2, %s31
        %v313 = vld [vmem:[%s0] sm:$0xf]
        %v314 = vld [vmem:[%s0 + $0x4] sm:$0xf]
        %v315 = vld [vmem:[%s0 + $0x8] sm:$0xf]
        %v316 = vld [vmem:[%s0 + $0xc] sm:$0xf]
        %s317 = scalar_lea.vmem %s0, 16
        %v318 = vld [vmem:[%s317] sm:$0xf]
        %v319 = vld [vmem:[%s317 + $0x4] sm:$0xf]
        %v320 = vld [vmem:[%s317 + $0x8] sm:$0xf]
        %v321 = vld [vmem:[%s317 + $0xc] sm:$0xf]
        %s322 = scalar_lea.vmem %s0, 32
        %v323 = vld [vmem:[%s322] sm:$0xf]
        %v324 = vld [vmem:[%s322 + $0x4] sm:$0xf]
        %v325 = vld [vmem:[%s322 + $0x8] sm:$0xf]
        %v326 = vld [vmem:[%s322 + $0xc] sm:$0xf]
        %v327 = vld [vmem:[%s1] sm:$0xff]
        %v328 = vld [vmem:[%s1 + $0x8] sm:$0xff]
        %v329 = vld [vmem:[%s1 + $0x10] sm:$0xff]
        %v330 = vld [vmem:[%s1 + $0x18] sm:$0xff]
        %s331 = scalar_lea.vmem %s1, 32
        %v332 = vld [vmem:[%s331] sm:$0xff]
        %v333 = vld [vmem:[%s331 + $0x8] sm:$0xff]
        %v334 = vld [vmem:[%s331 + $0x10] sm:$0xff]
        %v335 = vld [vmem:[%s331 + $0x18] sm:$0xff]
        %s336 = scalar_lea.vmem %s1, 64
        %v337 = vld [vmem:[%s336] sm:$0xff]
        %v338 = vld [vmem:[%s336 + $0x8] sm:$0xff]
        %v339 = vld [vmem:[%s336 + $0x10] sm:$0xff]
        %v340 = vld [vmem:[%s336 + $0x18] sm:$0xff]
        %v341 = vld [vmem:[%s271] sm:$0xff]
        %v342 = vld [vmem:[%s271 + $0x8] sm:$0xff]
        %v343 = vld [vmem:[%s271 + $0x10] sm:$0xff]
        %v344 = vld [vmem:[%s271 + $0x18] sm:$0xff]
        %346 = vset.pattern.permute.xlu0 0
        %347 = vperm.xlu0 %346, %v327
        %v348 = vpop.permute.xlu0 %347
        %351 = vset.pattern.permute.xlu0 0
        %352 = vperm.xlu0 %351, %v328
        %v353 = vpop.permute.xlu0 %352
        %356 = vset.pattern.permute.xlu0 0
        %357 = vperm.xlu0 %356, %v329
        %v358 = vpop.permute.xlu0 %357
        %361 = vset.pattern.permute.xlu0 0
        %362 = vperm.xlu0 %361, %v330
        %v363 = vpop.permute.xlu0 %362
        %v369 = vunpack.c.l.b16 %v313
        %v370 = vunpack.c.l.b16 %v314
        %v371 = vunpack.c.l.b16 %v315
        %v372 = vunpack.c.l.b16 %v316
        %v373 = vpack.c.b16 %v370, %v369
        %v374 = vpack.c.b16 %v372, %v371
        %v379 = vunpack.c.l.b16 %v341
        %v380 = vunpack.c.h.b16 %v341
        %v381 = vunpack.c.l.b16 %v342
        %v382 = vunpack.c.h.b16 %v342
        %v383 = vunpack.c.l.b16 %v343
        %v384 = vunpack.c.h.b16 %v343
        %v385 = vunpack.c.l.b16 %v344
        %v386 = vunpack.c.h.b16 %v344
        %v387 = vpack.c.b16 %v381, %v379
        %v388 = vpack.c.b16 %v382, %v380
        %v389 = vpack.c.b16 %v385, %v383
        %v390 = vpack.c.b16 %v386, %v384
        %vm395 = vcmask 261120
        %v397 = vsel %vm395, %v373, 0
        %v400 = vsel %vm395, %v374, 0
        %402 = vmatprep.subr.bf16.mxu0 %v388
        %403 = vmatpush1.bf16.msra.mxu0 %v387
        %404 = vmatprep.subr.bf16.mxu0 %v390
        %405 = vmatpush1.bf16.msra.mxu0 %v389
        %406 = vmatprep.subr.bf16.mxu0 0
        %407 = vmatpush1.bf16.msra.mxu0 0
        %408 = vmatprep.subr.bf16.mxu0 0
        %409 = vmatpush1.bf16.msra.mxu0 0
        %410 = vmatprep.subr.bf16.mxu0 0
        %411 = vmatpush1.bf16.msra.mxu0 0
        %412 = vmatprep.subr.bf16.mxu0 0
        %413 = vmatpush1.bf16.msra.mxu0 0
        %414 = vmatprep.subr.bf16.mxu0 0
        %415 = vmatpush1.bf16.msra.mxu0 0
        %416 = vmatprep.subr.bf16.mxu0 0
        %417 = vmatpush1.bf16.msra.mxu0 0
        %418 = vmatprep.subr.bf16.mxu0 0
        %419 = vmatpush1.bf16.msra.mxu0 0
        %420 = vmatprep.subr.bf16.mxu0 0
        %421 = vmatpush1.bf16.msra.mxu0 0
        %422 = vmatprep.subr.bf16.mxu0 0
        %423 = vmatpush1.bf16.msra.mxu0 0
        %424 = vmatprep.subr.bf16.mxu0 0
        %425 = vmatpush1.bf16.msra.mxu0 0
        %426 = vmatprep.subr.bf16.mxu0 0
        %427 = vmatpush1.bf16.msra.mxu0 0
        %428 = vmatprep.subr.bf16.mxu0 0
        %429 = vmatpush1.bf16.msra.mxu0 0
        %430 = vmatprep.subr.bf16.mxu0 0
        %431 = vmatpush1.bf16.msra.mxu0 0
        %432 = vmatprep.subr.bf16.mxu0 0
        %433 = vmatpush1.bf16.msra.mxu0 0
        %434 = vmatprep.mubr.bf16.mxu0 0
        %435 = vmatmul.mubr.bf16.gmra.mrb[0].mxu0 %v397
        %v436 = vpop.f32.mrb[0].mxu0
        %v437 = vadd.f32 %v348, %v436
        %v438 = vpop.f32.mrb[0].mxu0
        %v439 = vadd.f32 %v348, %v438
        %v440 = vpop.f32.mrb[0].mxu0
        %v441 = vadd.f32 %v353, %v440
        %v442 = vpop.f32.mrb[0].mxu0
        %v443 = vadd.f32 %v353, %v442
        %444 = vmatprep.mubr.bf16.mxu0 0
        %445 = vmatmul.mubr.bf16.gmra.mrb[0].mxu0 %v400
        %v446 = vpop.f32.mrb[0].mxu0
        %v447 = vadd.f32 %v358, %v446
        %v448 = vpop.f32.mrb[0].mxu0
        %v449 = vadd.f32 %v358, %v448
        %v450 = vpop.f32.mrb[0].mxu0
        %v451 = vadd.f32 %v363, %v450
        %v452 = vpop.f32.mrb[0].mxu0
        %v453 = vadd.f32 %v363, %v452
        %454 = vdwg.mxu0
        %vm455 = vcmp.gt.f32.partialorder %v437, 0.5
        %vm456 = vcmp.gt.f32.partialorder %v439, 0.5
        %vm457 = vcmp.gt.f32.partialorder %v441, 0.5
        %vm458 = vcmp.gt.f32.partialorder %v443, 0.5
        %vm459 = vcmp.gt.f32.partialorder %v447, 0.5
        %vm460 = vcmp.gt.f32.partialorder %v449, 0.5
        %vm461 = vcmp.gt.f32.partialorder %v451, 0.5
        %vm462 = vcmp.gt.f32.partialorder %v453, 0.5
        %v463 = vsel %vm455, 1, 0
        %v464 = vsel %vm456, 1, 0
        %v465 = vsel %vm457, 1, 0
        %v466 = vsel %vm458, 1, 0
        %v467 = vsel %vm459, 1, 0
        %v468 = vsel %vm460, 1, 0
        %v469 = vsel %vm461, 1, 0
        %v470 = vsel %vm462, 1, 0
        %v471 = vcvt.s32.f32 %v463
        %v472 = vcvt.s32.f32 %v464
        %v473 = vcvt.s32.f32 %v465
        %v474 = vcvt.s32.f32 %v466
        %v475 = vcvt.s32.f32 %v467
        %v476 = vcvt.s32.f32 %v468
        %v477 = vcvt.s32.f32 %v469
        %v478 = vcvt.s32.f32 %v470
        %v479 = vpack.c.bf16 %v473, %v471
        %v480 = vpack.c.bf16 %v474, %v472
        %v481 = vpack.c.bf16 %v477, %v475
        %v482 = vpack.c.bf16 %v478, %v476
        %v487 = vunpack.c.l.b16 %v479
        %v488 = vunpack.c.l.b16 %v480
        %v489 = vunpack.c.h.b16 %v479
        %v490 = vunpack.c.h.b16 %v480
        %v491 = vunpack.c.l.b16 %v481
        %v492 = vunpack.c.l.b16 %v482
        %v493 = vunpack.c.h.b16 %v481
        %v494 = vunpack.c.h.b16 %v482
        %v495 = vpack.c.b16 %v488, %v487
        %v496 = vpack.c.b16 %v490, %v489
        %v497 = vpack.c.b16 %v492, %v491
        %v498 = vpack.c.b16 %v494, %v493
        %503 = vst [vmem:[%s293] sm:$0xff] %v495
        %504 = vst [vmem:[%s293 + $0x8] sm:$0xff] %v496
        %505 = vst [vmem:[%s293 + $0x10] sm:$0xff] %v497
        %506 = vst [vmem:[%s293 + $0x18] sm:$0xff] %v498
        %508 = vset.pattern.permute.xlu0 0
        %509 = vperm.xlu0 %508, %v332
        %v510 = vpop.permute.xlu0 %509
        %513 = vset.pattern.permute.xlu0 0
        %514 = vperm.xlu0 %513, %v333
        %v515 = vpop.permute.xlu0 %514
        %518 = vset.pattern.permute.xlu0 0
        %519 = vperm.xlu0 %518, %v334
        %v520 = vpop.permute.xlu0 %519
        %523 = vset.pattern.permute.xlu0 0
        %524 = vperm.xlu0 %523, %v335
        %v525 = vpop.permute.xlu0 %524
        %v531 = vunpack.c.l.b16 %v318
        %v532 = vunpack.c.l.b16 %v319
        %v533 = vunpack.c.l.b16 %v320
        %v534 = vunpack.c.l.b16 %v321
        %v535 = vpack.c.b16 %v532, %v531
        %v536 = vpack.c.b16 %v534, %v533
        %v538 = vsel %vm395, %v535, 0
        %v541 = vsel %vm395, %v536, 0
        %543 = vmatprep.subr.bf16.mxu0 %v388
        %544 = vmatpush1.bf16.msra.mxu0 %v387
        %545 = vmatprep.subr.bf16.mxu0 %v390
        %546 = vmatpush1.bf16.msra.mxu0 %v389
        %547 = vmatprep.subr.bf16.mxu0 0
        %548 = vmatpush1.bf16.msra.mxu0 0
        %549 = vmatprep.subr.bf16.mxu0 0
        %550 = vmatpush1.bf16.msra.mxu0 0
        %551 = vmatprep.subr.bf16.mxu0 0
        %552 = vmatpush1.bf16.msra.mxu0 0
        %553 = vmatprep.subr.bf16.mxu0 0
        %554 = vmatpush1.bf16.msra.mxu0 0
        %555 = vmatprep.subr.bf16.mxu0 0
        %556 = vmatpush1.bf16.msra.mxu0 0
        %557 = vmatprep.subr.bf16.mxu0 0
        %558 = vmatpush1.bf16.msra.mxu0 0
        %559 = vmatprep.subr.bf16.mxu0 0
        %560 = vmatpush1.bf16.msra.mxu0 0
        %561 = vmatprep.subr.bf16.mxu0 0
        %562 = vmatpush1.bf16.msra.mxu0 0
        %563 = vmatprep.subr.bf16.mxu0 0
        %564 = vmatpush1.bf16.msra.mxu0 0
        %565 = vmatprep.subr.bf16.mxu0 0
        %566 = vmatpush1.bf16.msra.mxu0 0
        %567 = vmatprep.subr.bf16.mxu0 0
        %568 = vmatpush1.bf16.msra.mxu0 0
        %569 = vmatprep.subr.bf16.mxu0 0
        %570 = vmatpush1.bf16.msra.mxu0 0
        %571 = vmatprep.subr.bf16.mxu0 0
        %572 = vmatpush1.bf16.msra.mxu0 0
        %573 = vmatprep.subr.bf16.mxu0 0
        %574 = vmatpush1.bf16.msra.mxu0 0
        %575 = vmatprep.mubr.bf16.mxu0 0
        %576 = vmatmul.mubr.bf16.gmra.mrb[0].mxu0 %v538
        %v577 = vpop.f32.mrb[0].mxu0
        %v578 = vadd.f32 %v510, %v577
        %v579 = vpop.f32.mrb[0].mxu0
        %v580 = vadd.f32 %v510, %v579
        %v581 = vpop.f32.mrb[0].mxu0
        %v582 = vadd.f32 %v515, %v581
        %v583 = vpop.f32.mrb[0].mxu0
        %v584 = vadd.f32 %v515, %v583
        %585 = vmatprep.mubr.bf16.mxu0 0
        %586 = vmatmul.mubr.bf16.gmra.mrb[0].mxu0 %v541
        %v587 = vpop.f32.mrb[0].mxu0
        %v588 = vadd.f32 %v520, %v587
        %v589 = vpop.f32.mrb[0].mxu0
        %v590 = vadd.f32 %v520, %v589
        %v591 = vpop.f32.mrb[0].mxu0
        %v592 = vadd.f32 %v525, %v591
        %v593 = vpop.f32.mrb[0].mxu0
        %v594 = vadd.f32 %v525, %v593
        %595 = vdwg.mxu0
        %vm596 = vcmp.gt.f32.partialorder %v578, 0.5
        %vm597 = vcmp.gt.f32.partialorder %v580, 0.5
        %vm598 = vcmp.gt.f32.partialorder %v582, 0.5
        %vm599 = vcmp.gt.f32.partialorder %v584, 0.5
        %vm600 = vcmp.gt.f32.partialorder %v588, 0.5
        %vm601 = vcmp.gt.f32.partialorder %v590, 0.5
        %vm602 = vcmp.gt.f32.partialorder %v592, 0.5
        %vm603 = vcmp.gt.f32.partialorder %v594, 0.5
        %v604 = vsel %vm596, 1, 0
        %v605 = vsel %vm597, 1, 0
        %v606 = vsel %vm598, 1, 0
        %v607 = vsel %vm599, 1, 0
        %v608 = vsel %vm600, 1, 0
        %v609 = vsel %vm601, 1, 0
        %v610 = vsel %vm602, 1, 0
        %v611 = vsel %vm603, 1, 0
        %v612 = vcvt.s32.f32 %v604
        %v613 = vcvt.s32.f32 %v605
        %v614 = vcvt.s32.f32 %v606
        %v615 = vcvt.s32.f32 %v607
        %v616 = vcvt.s32.f32 %v608
        %v617 = vcvt.s32.f32 %v609
        %v618 = vcvt.s32.f32 %v610
        %v619 = vcvt.s32.f32 %v611
        %v620 = vpack.c.bf16 %v614, %v612
        %v621 = vpack.c.bf16 %v615, %v613
        %v622 = vpack.c.bf16 %v618, %v616
        %v623 = vpack.c.bf16 %v619, %v617
        %v628 = vunpack.c.l.b16 %v620
        %v629 = vunpack.c.l.b16 %v621
        %v630 = vunpack.c.h.b16 %v620
        %v631 = vunpack.c.h.b16 %v621
        %v632 = vunpack.c.l.b16 %v622
        %v633 = vunpack.c.l.b16 %v623
        %v634 = vunpack.c.h.b16 %v622
        %v635 = vunpack.c.h.b16 %v623
        %v636 = vpack.c.b16 %v629, %v628
        %v637 = vpack.c.b16 %v631, %v630
        %v638 = vpack.c.b16 %v633, %v632
        %v639 = vpack.c.b16 %v635, %v634
        %644 = vst [vmem:[%s300] sm:$0xff] %v636
        %645 = vst [vmem:[%s300 + $0x8] sm:$0xff] %v637
        %646 = vst [vmem:[%s300 + $0x10] sm:$0xff] %v638
        %647 = vst [vmem:[%s300 + $0x18] sm:$0xff] %v639
        %649 = vset.pattern.permute.xlu0 0
        %650 = vperm.xlu0 %649, %v337
        %v651 = vpop.permute.xlu0 %650
        %654 = vset.pattern.permute.xlu0 0
        %655 = vperm.xlu0 %654, %v338
        %v656 = vpop.permute.xlu0 %655
        %659 = vset.pattern.permute.xlu0 0
        %660 = vperm.xlu0 %659, %v339
        %v661 = vpop.permute.xlu0 %660
        %664 = vset.pattern.permute.xlu0 0
        %665 = vperm.xlu0 %664, %v340
        %v666 = vpop.permute.xlu0 %665
        %v672 = vunpack.c.l.b16 %v323
        %v673 = vunpack.c.l.b16 %v324
        %v674 = vunpack.c.l.b16 %v325
        %v675 = vunpack.c.l.b16 %v326
        %v676 = vpack.c.b16 %v673, %v672
        %v677 = vpack.c.b16 %v675, %v674
        %v679 = vsel %vm395, %v676, 0
        %v682 = vsel %vm395, %v677, 0
        %684 = vmatprep.subr.bf16.mxu0 %v388
        %685 = vmatpush1.bf16.msra.mxu0 %v387
        %686 = vmatprep.subr.bf16.mxu0 %v390
        %687 = vmatpush1.bf16.msra.mxu0 %v389
        %688 = vmatprep.subr.bf16.mxu0 0
        %689 = vmatpush1.bf16.msra.mxu0 0
        %690 = vmatprep.subr.bf16.mxu0 0
        %691 = vmatpush1.bf16.msra.mxu0 0
        %692 = vmatprep.subr.bf16.mxu0 0
        %693 = vmatpush1.bf16.msra.mxu0 0
        %694 = vmatprep.subr.bf16.mxu0 0
        %695 = vmatpush1.bf16.msra.mxu0 0
        %696 = vmatprep.subr.bf16.mxu0 0
        %697 = vmatpush1.bf16.msra.mxu0 0
        %698 = vmatprep.subr.bf16.mxu0 0
        %699 = vmatpush1.bf16.msra.mxu0 0
        %700 = vmatprep.subr.bf16.mxu0 0
        %701 = vmatpush1.bf16.msra.mxu0 0
        %702 = vmatprep.subr.bf16.mxu0 0
        %703 = vmatpush1.bf16.msra.mxu0 0
        %704 = vmatprep.subr.bf16.mxu0 0
        %705 = vmatpush1.bf16.msra.mxu0 0
        %706 = vmatprep.subr.bf16.mxu0 0
        %707 = vmatpush1.bf16.msra.mxu0 0
        %708 = vmatprep.subr.bf16.mxu0 0
        %709 = vmatpush1.bf16.msra.mxu0 0
        %710 = vmatprep.subr.bf16.mxu0 0
        %711 = vmatpush1.bf16.msra.mxu0 0
        %712 = vmatprep.subr.bf16.mxu0 0
        %713 = vmatpush1.bf16.msra.mxu0 0
        %714 = vmatprep.subr.bf16.mxu0 0
        %715 = vmatpush1.bf16.msra.mxu0 0
        %716 = vmatprep.mubr.bf16.mxu0 0
        %717 = vmatmul.mubr.bf16.gmra.mrb[0].mxu0 %v679
        %v718 = vpop.f32.mrb[0].mxu0
        %v719 = vadd.f32 %v651, %v718
        %v720 = vpop.f32.mrb[0].mxu0
        %v721 = vadd.f32 %v651, %v720
        %v722 = vpop.f32.mrb[0].mxu0
        %v723 = vadd.f32 %v656, %v722
        %v724 = vpop.f32.mrb[0].mxu0
        %v725 = vadd.f32 %v656, %v724
        %726 = vmatprep.mubr.bf16.mxu0 0
        %727 = vmatmul.mubr.bf16.gmra.mrb[0].mxu0 %v682
        %v728 = vpop.f32.mrb[0].mxu0
        %v729 = vadd.f32 %v661, %v728
        %v730 = vpop.f32.mrb[0].mxu0
        %v731 = vadd.f32 %v661, %v730
        %v732 = vpop.f32.mrb[0].mxu0
        %v733 = vadd.f32 %v666, %v732
        %v734 = vpop.f32.mrb[0].mxu0
        %v735 = vadd.f32 %v666, %v734
        %736 = vdwg.mxu0
        %vm737 = vcmp.gt.f32.partialorder %v719, 0.5
        %vm738 = vcmp.gt.f32.partialorder %v721, 0.5
        %vm739 = vcmp.gt.f32.partialorder %v723, 0.5
        %vm740 = vcmp.gt.f32.partialorder %v725, 0.5
        %vm741 = vcmp.gt.f32.partialorder %v729, 0.5
        %vm742 = vcmp.gt.f32.partialorder %v731, 0.5
        %vm743 = vcmp.gt.f32.partialorder %v733, 0.5
        %vm744 = vcmp.gt.f32.partialorder %v735, 0.5
        %v745 = vsel %vm737, 1, 0
        %v746 = vsel %vm738, 1, 0
        %v747 = vsel %vm739, 1, 0
        %v748 = vsel %vm740, 1, 0
        %v749 = vsel %vm741, 1, 0
        %v750 = vsel %vm742, 1, 0
        %v751 = vsel %vm743, 1, 0
        %v752 = vsel %vm744, 1, 0
        %v753 = vcvt.s32.f32 %v745
        %v754 = vcvt.s32.f32 %v746
        %v755 = vcvt.s32.f32 %v747
        %v756 = vcvt.s32.f32 %v748
        %v757 = vcvt.s32.f32 %v749
        %v758 = vcvt.s32.f32 %v750
        %v759 = vcvt.s32.f32 %v751
        %v760 = vcvt.s32.f32 %v752
        %v761 = vpack.c.bf16 %v755, %v753
        %v762 = vpack.c.bf16 %v756, %v754
        %v763 = vpack.c.bf16 %v759, %v757
        %v764 = vpack.c.bf16 %v760, %v758
        %v769 = vunpack.c.l.b16 %v761
        %v770 = vunpack.c.l.b16 %v762
        %v771 = vunpack.c.h.b16 %v761
        %v772 = vunpack.c.h.b16 %v762
        %v773 = vunpack.c.l.b16 %v763
        %v774 = vunpack.c.l.b16 %v764
        %v775 = vunpack.c.h.b16 %v763
        %v776 = vunpack.c.h.b16 %v764
        %v777 = vpack.c.b16 %v770, %v769
        %v778 = vpack.c.b16 %v772, %v771
        %v779 = vpack.c.b16 %v774, %v773
        %v780 = vpack.c.b16 %v776, %v775
        %785 = vst [vmem:[%s307] sm:$0xff] %v777
        %786 = vst [vmem:[%s307 + $0x8] sm:$0xff] %v778
        %787 = vst [vmem:[%s307 + $0x10] sm:$0xff] %v779
        %788 = vst [vmem:[%s307 + $0x18] sm:$0xff] %v780
        %s789 = scalar_lea.vmem %s271, 32 [#allocation2]
        %v790 = vld [vmem:[%s789] sm:$0xff]
        %v791 = vld [vmem:[%s789 + $0x8] sm:$0xff]
        %v792 = vld [vmem:[%s789 + $0x10] sm:$0xff]
        %v793 = vld [vmem:[%s789 + $0x18] sm:$0xff]
        %v798 = vunpack.c.l.b16 %v790
        %v799 = vunpack.c.h.b16 %v790
        %v800 = vunpack.c.l.b16 %v791
        %v801 = vunpack.c.h.b16 %v791
        %v802 = vunpack.c.l.b16 %v792
        %v803 = vunpack.c.h.b16 %v792
        %v804 = vunpack.c.l.b16 %v793
        %v805 = vunpack.c.h.b16 %v793
        %v806 = vpack.c.b16 %v800, %v798
        %v807 = vpack.c.b16 %v801, %v799
        %v808 = vpack.c.b16 %v804, %v802
        %v809 = vpack.c.b16 %v805, %v803
        %814 = vmatprep.subr.bf16.mxu0 %v807
        %815 = vmatpush1.bf16.msra.mxu0 %v806
        %816 = vmatprep.subr.bf16.mxu0 %v809
        %817 = vmatpush1.bf16.msra.mxu0 %v808
        %818 = vmatprep.subr.bf16.mxu0 0
        %819 = vmatpush1.bf16.msra.mxu0 0
        %820 = vmatprep.subr.bf16.mxu0 0
        %821 = vmatpush1.bf16.msra.mxu0 0
        %822 = vmatprep.subr.bf16.mxu0 0
        %823 = vmatpush1.bf16.msra.mxu0 0
        %824 = vmatprep.subr.bf16.mxu0 0
        %825 = vmatpush1.bf16.msra.mxu0 0
        %826 = vmatprep.subr.bf16.mxu0 0
        %827 = vmatpush1.bf16.msra.mxu0 0
        %828 = vmatprep.subr.bf16.mxu0 0
        %829 = vmatpush1.bf16.msra.mxu0 0
        %830 = vmatprep.subr.bf16.mxu0 0
        %831 = vmatpush1.bf16.msra.mxu0 0
        %832 = vmatprep.subr.bf16.mxu0 0
        %833 = vmatpush1.bf16.msra.mxu0 0
        %834 = vmatprep.subr.bf16.mxu0 0
        %835 = vmatpush1.bf16.msra.mxu0 0
        %836 = vmatprep.subr.bf16.mxu0 0
        %837 = vmatpush1.bf16.msra.mxu0 0
        %838 = vmatprep.subr.bf16.mxu0 0
        %839 = vmatpush1.bf16.msra.mxu0 0
        %840 = vmatprep.subr.bf16.mxu0 0
        %841 = vmatpush1.bf16.msra.mxu0 0
        %842 = vmatprep.subr.bf16.mxu0 0
        %843 = vmatpush1.bf16.msra.mxu0 0
        %844 = vmatprep.subr.bf16.mxu0 0
        %845 = vmatpush1.bf16.msra.mxu0 0
        %846 = vmatprep.mubr.bf16.mxu0 0
        %847 = vmatmul.mubr.bf16.gmra.mrb[0].mxu0 %v397
        %v848 = vpop.f32.mrb[0].mxu0
        %v849 = vadd.f32 %v348, %v848
        %v850 = vpop.f32.mrb[0].mxu0
        %v851 = vadd.f32 %v348, %v850
        %v852 = vpop.f32.mrb[0].mxu0
        %v853 = vadd.f32 %v353, %v852
        %v854 = vpop.f32.mrb[0].mxu0
        %v855 = vadd.f32 %v353, %v854
        %856 = vmatprep.mubr.bf16.mxu0 0
        %857 = vmatmul.mubr.bf16.gmra.mrb[0].mxu0 %v400
        %v858 = vpop.f32.mrb[0].mxu0
        %v859 = vadd.f32 %v358, %v858
        %v860 = vpop.f32.mrb[0].mxu0
        %v861 = vadd.f32 %v358, %v860
        %v862 = vpop.f32.mrb[0].mxu0
        %v863 = vadd.f32 %v363, %v862
        %v864 = vpop.f32.mrb[0].mxu0
        %v865 = vadd.f32 %v363, %v864
        %866 = vdwg.mxu0
        %v867 = vmul.f32 %v437, 0.25
        %v868 = vmul.f32 %v439, 0.25
        %v869 = vmul.f32 %v441, 0.25
        %v870 = vmul.f32 %v443, 0.25
        %v871 = vmul.f32 %v447, 0.25
        %v872 = vmul.f32 %v449, 0.25
        %v873 = vmul.f32 %v451, 0.25
        %v874 = vmul.f32 %v453, 0.25
        %v875 = vadd.f32 %v867, %v849
        %v876 = vadd.f32 %v868, %v851
        %v877 = vadd.f32 %v869, %v853
        %v878 = vadd.f32 %v870, %v855
        %v879 = vadd.f32 %v871, %v859
        %v880 = vadd.f32 %v872, %v861
        %v881 = vadd.f32 %v873, %v863
        %v882 = vadd.f32 %v874, %v865
        %v883 = vsel %vm455, %v849, %v875
        %v884 = vsel %vm456, %v851, %v876
        %v885 = vsel %vm457, %v853, %v877
        %v886 = vsel %vm458, %v855, %v878
        %v887 = vsel %vm459, %v859, %v879
        %v888 = vsel %vm460, %v861, %v880
        %v889 = vsel %vm461, %v863, %v881
        %v890 = vsel %vm462, %v865, %v882
        %vm891 = vcmp.gt.f32.partialorder %v883, 0.5
        %vm892 = vcmp.gt.f32.partialorder %v884, 0.5
        %vm893 = vcmp.gt.f32.partialorder %v885, 0.5
        %vm894 = vcmp.gt.f32.partialorder %v886, 0.5
        %vm895 = vcmp.gt.f32.partialorder %v887, 0.5
        %vm896 = vcmp.gt.f32.partialorder %v888, 0.5
        %vm897 = vcmp.gt.f32.partialorder %v889, 0.5
        %vm898 = vcmp.gt.f32.partialorder %v890, 0.5
        %v899 = vsel %vm891, 1, 0
        %v900 = vsel %vm892, 1, 0
        %v901 = vsel %vm893, 1, 0
        %v902 = vsel %vm894, 1, 0
        %v903 = vsel %vm895, 1, 0
        %v904 = vsel %vm896, 1, 0
        %v905 = vsel %vm897, 1, 0
        %v906 = vsel %vm898, 1, 0
        %v907 = vcvt.s32.f32 %v899
        %v908 = vcvt.s32.f32 %v900
        %v909 = vcvt.s32.f32 %v901
        %v910 = vcvt.s32.f32 %v902
        %v911 = vcvt.s32.f32 %v903
        %v912 = vcvt.s32.f32 %v904
        %v913 = vcvt.s32.f32 %v905
        %v914 = vcvt.s32.f32 %v906
        %v915 = vpack.c.bf16 %v909, %v907
        %v916 = vpack.c.bf16 %v910, %v908
        %v917 = vpack.c.bf16 %v913, %v911
        %v918 = vpack.c.bf16 %v914, %v912
        %v923 = vunpack.c.l.b16 %v915
        %v924 = vunpack.c.l.b16 %v916
        %v925 = vunpack.c.h.b16 %v915
        %v926 = vunpack.c.h.b16 %v916
        %v927 = vunpack.c.l.b16 %v917
        %v928 = vunpack.c.l.b16 %v918
        %v929 = vunpack.c.h.b16 %v917
        %v930 = vunpack.c.h.b16 %v918
        %v931 = vpack.c.b16 %v924, %v923
        %v932 = vpack.c.b16 %v926, %v925
        %v933 = vpack.c.b16 %v928, %v927
        %v934 = vpack.c.b16 %v930, %v929
        %s939 = scalar_lea.vmem %s293, 32 [#allocation5]
        %940 = vst [vmem:[%s939] sm:$0xff] %v931
        %941 = vst [vmem:[%s939 + $0x8] sm:$0xff] %v932
        %942 = vst [vmem:[%s939 + $0x10] sm:$0xff] %v933
        %943 = vst [vmem:[%s939 + $0x18] sm:$0xff] %v934
        %944 = vmatprep.subr.bf16.mxu0 %v807
        %945 = vmatpush1.bf16.msra.mxu0 %v806
        %946 = vmatprep.subr.bf16.mxu0 %v809
        %947 = vmatpush1.bf16.msra.mxu0 %v808
        %948 = vmatprep.subr.bf16.mxu0 0
        %949 = vmatpush1.bf16.msra.mxu0 0
        %950 = vmatprep.subr.bf16.mxu0 0
        %951 = vmatpush1.bf16.msra.mxu0 0
        %952 = vmatprep.subr.bf16.mxu0 0
        %953 = vmatpush1.bf16.msra.mxu0 0
        %954 = vmatprep.subr.bf16.mxu0 0
        %955 = vmatpush1.bf16.msra.mxu0 0
        %956 = vmatprep.subr.bf16.mxu0 0
        %957 = vmatpush1.bf16.msra.mxu0 0
        %958 = vmatprep.subr.bf16.mxu0 0
        %959 = vmatpush1.bf16.msra.mxu0 0
        %960 = vmatprep.subr.bf16.mxu0 0
        %961 = vmatpush1.bf16.msra.mxu0 0
        %962 = vmatprep.subr.bf16.mxu0 0
        %963 = vmatpush1.bf16.msra.mxu0 0
        %964 = vmatprep.subr.bf16.mxu0 0
        %965 = vmatpush1.bf16.msra.mxu0 0
        %966 = vmatprep.subr.bf16.mxu0 0
        %967 = vmatpush1.bf16.msra.mxu0 0
        %968 = vmatprep.subr.bf16.mxu0 0
        %969 = vmatpush1.bf16.msra.mxu0 0
        %970 = vmatprep.subr.bf16.mxu0 0
        %971 = vmatpush1.bf16.msra.mxu0 0
        %972 = vmatprep.subr.bf16.mxu0 0
        %973 = vmatpush1.bf16.msra.mxu0 0
        %974 = vmatprep.subr.bf16.mxu0 0
        %975 = vmatpush1.bf16.msra.mxu0 0
        %976 = vmatprep.mubr.bf16.mxu0 0
        %977 = vmatmul.mubr.bf16.gmra.mrb[0].mxu0 %v538
        %v978 = vpop.f32.mrb[0].mxu0
        %v979 = vadd.f32 %v510, %v978
        %v980 = vpop.f32.mrb[0].mxu0
        %v981 = vadd.f32 %v510, %v980
        %v982 = vpop.f32.mrb[0].mxu0
        %v983 = vadd.f32 %v515, %v982
        %v984 = vpop.f32.mrb[0].mxu0
        %v985 = vadd.f32 %v515, %v984
        %986 = vmatprep.mubr.bf16.mxu0 0
        %987 = vmatmul.mubr.bf16.gmra.mrb[0].mxu0 %v541
        %v988 = vpop.f32.mrb[0].mxu0
        %v989 = vadd.f32 %v520, %v988
        %v990 = vpop.f32.mrb[0].mxu0
        %v991 = vadd.f32 %v520, %v990
        %v992 = vpop.f32.mrb[0].mxu0
        %v993 = vadd.f32 %v525, %v992
        %v994 = vpop.f32.mrb[0].mxu0
        %v995 = vadd.f32 %v525, %v994
        %996 = vdwg.mxu0
        %v997 = vmul.f32 %v578, 0.25
        %v998 = vmul.f32 %v580, 0.25
        %v999 = vmul.f32 %v582, 0.25
        %v1000 = vmul.f32 %v584, 0.25
        %v1001 = vmul.f32 %v588, 0.25
        %v1002 = vmul.f32 %v590, 0.25
        %v1003 = vmul.f32 %v592, 0.25
        %v1004 = vmul.f32 %v594, 0.25
        %v1005 = vadd.f32 %v997, %v979
        %v1006 = vadd.f32 %v998, %v981
        %v1007 = vadd.f32 %v999, %v983
        %v1008 = vadd.f32 %v1000, %v985
        %v1009 = vadd.f32 %v1001, %v989
        %v1010 = vadd.f32 %v1002, %v991
        %v1011 = vadd.f32 %v1003, %v993
        %v1012 = vadd.f32 %v1004, %v995
        %v1013 = vsel %vm596, %v979, %v1005
        %v1014 = vsel %vm597, %v981, %v1006
        %v1015 = vsel %vm598, %v983, %v1007
        %v1016 = vsel %vm599, %v985, %v1008
        %v1017 = vsel %vm600, %v989, %v1009
        %v1018 = vsel %vm601, %v991, %v1010
        %v1019 = vsel %vm602, %v993, %v1011
        %v1020 = vsel %vm603, %v995, %v1012
        %vm1021 = vcmp.gt.f32.partialorder %v1013, 0.5
        %vm1022 = vcmp.gt.f32.partialorder %v1014, 0.5
        %vm1023 = vcmp.gt.f32.partialorder %v1015, 0.5
        %vm1024 = vcmp.gt.f32.partialorder %v1016, 0.5
        %vm1025 = vcmp.gt.f32.partialorder %v1017, 0.5
        %vm1026 = vcmp.gt.f32.partialorder %v1018, 0.5
        %vm1027 = vcmp.gt.f32.partialorder %v1019, 0.5
        %vm1028 = vcmp.gt.f32.partialorder %v1020, 0.5
        %v1029 = vsel %vm1021, 1, 0
        %v1030 = vsel %vm1022, 1, 0
        %v1031 = vsel %vm1023, 1, 0
        %v1032 = vsel %vm1024, 1, 0
        %v1033 = vsel %vm1025, 1, 0
        %v1034 = vsel %vm1026, 1, 0
        %v1035 = vsel %vm1027, 1, 0
        %v1036 = vsel %vm1028, 1, 0
        %v1037 = vcvt.s32.f32 %v1029
        %v1038 = vcvt.s32.f32 %v1030
        %v1039 = vcvt.s32.f32 %v1031
        %v1040 = vcvt.s32.f32 %v1032
        %v1041 = vcvt.s32.f32 %v1033
        %v1042 = vcvt.s32.f32 %v1034
        %v1043 = vcvt.s32.f32 %v1035
        %v1044 = vcvt.s32.f32 %v1036
        %v1045 = vpack.c.bf16 %v1039, %v1037
        %v1046 = vpack.c.bf16 %v1040, %v1038
        %v1047 = vpack.c.bf16 %v1043, %v1041
        %v1048 = vpack.c.bf16 %v1044, %v1042
        %v1053 = vunpack.c.l.b16 %v1045
        %v1054 = vunpack.c.l.b16 %v1046
        %v1055 = vunpack.c.h.b16 %v1045
        %v1056 = vunpack.c.h.b16 %v1046
        %v1057 = vunpack.c.l.b16 %v1047
        %v1058 = vunpack.c.l.b16 %v1048
        %v1059 = vunpack.c.h.b16 %v1047
        %v1060 = vunpack.c.h.b16 %v1048
        %v1061 = vpack.c.b16 %v1054, %v1053
        %v1062 = vpack.c.b16 %v1056, %v1055
        %v1063 = vpack.c.b16 %v1058, %v1057
        %v1064 = vpack.c.b16 %v1060, %v1059
        %s1069 = scalar_lea.vmem %s300, 32 [#allocation6]
        %1070 = vst [vmem:[%s1069] sm:$0xff] %v1061
        %1071 = vst [vmem:[%s1069 + $0x8] sm:$0xff] %v1062
        %1072 = vst [vmem:[%s1069 + $0x10] sm:$0xff] %v1063
        %1073 = vst [vmem:[%s1069 + $0x18] sm:$0xff] %v1064
        %1074 = vmatprep.subr.bf16.mxu0 %v807
        %1075 = vmatpush1.bf16.msra.mxu0 %v806
        %1076 = vmatprep.subr.bf16.mxu0 %v809
        %1077 = vmatpush1.bf16.msra.mxu0 %v808
        %1078 = vmatprep.subr.bf16.mxu0 0
        %1079 = vmatpush1.bf16.msra.mxu0 0
        %1080 = vmatprep.subr.bf16.mxu0 0
        %1081 = vmatpush1.bf16.msra.mxu0 0
        %1082 = vmatprep.subr.bf16.mxu0 0
        %1083 = vmatpush1.bf16.msra.mxu0 0
        %1084 = vmatprep.subr.bf16.mxu0 0
        %1085 = vmatpush1.bf16.msra.mxu0 0
        %1086 = vmatprep.subr.bf16.mxu0 0
        %1087 = vmatpush1.bf16.msra.mxu0 0
        %1088 = vmatprep.subr.bf16.mxu0 0
        %1089 = vmatpush1.bf16.msra.mxu0 0
        %1090 = vmatprep.subr.bf16.mxu0 0
        %1091 = vmatpush1.bf16.msra.mxu0 0
        %1092 = vmatprep.subr.bf16.mxu0 0
        %1093 = vmatpush1.bf16.msra.mxu0 0
        %1094 = vmatprep.subr.bf16.mxu0 0
        %1095 = vmatpush1.bf16.msra.mxu0 0
        %1096 = vmatprep.subr.bf16.mxu0 0
        %1097 = vmatpush1.bf16.msra.mxu0 0
        %1098 = vmatprep.subr.bf16.mxu0 0
        %1099 = vmatpush1.bf16.msra.mxu0 0
        %1100 = vmatprep.subr.bf16.mxu0 0
        %1101 = vmatpush1.bf16.msra.mxu0 0
        %1102 = vmatprep.subr.bf16.mxu0 0
        %1103 = vmatpush1.bf16.msra.mxu0 0
        %1104 = vmatprep.subr.bf16.mxu0 0
        %1105 = vmatpush1.bf16.msra.mxu0 0
        %1106 = vmatprep.mubr.bf16.mxu0 0
        %1107 = vmatmul.mubr.bf16.gmra.mrb[0].mxu0 %v679
        %v1108 = vpop.f32.mrb[0].mxu0
        %v1109 = vadd.f32 %v651, %v1108
        %v1110 = vpop.f32.mrb[0].mxu0
        %v1111 = vadd.f32 %v651, %v1110
        %v1112 = vpop.f32.mrb[0].mxu0
        %v1113 = vadd.f32 %v656, %v1112
        %v1114 = vpop.f32.mrb[0].mxu0
        %v1115 = vadd.f32 %v656, %v1114
        %1116 = vmatprep.mubr.bf16.mxu0 0
        %1117 = vmatmul.mubr.bf16.gmra.mrb[0].mxu0 %v682
        %v1118 = vpop.f32.mrb[0].mxu0
        %v1119 = vadd.f32 %v661, %v1118
        %v1120 = vpop.f32.mrb[0].mxu0
        %v1121 = vadd.f32 %v661, %v1120
        %v1122 = vpop.f32.mrb[0].mxu0
        %v1123 = vadd.f32 %v666, %v1122
        %v1124 = vpop.f32.mrb[0].mxu0
        %v1125 = vadd.f32 %v666, %v1124
        %1126 = vdwg.mxu0
        %v1127 = vmul.f32 %v719, 0.25
        %v1128 = vmul.f32 %v721, 0.25
        %v1129 = vmul.f32 %v723, 0.25
        %v1130 = vmul.f32 %v725, 0.25
        %v1131 = vmul.f32 %v729, 0.25
        %v1132 = vmul.f32 %v731, 0.25
        %v1133 = vmul.f32 %v733, 0.25
        %v1134 = vmul.f32 %v735, 0.25
        %v1135 = vadd.f32 %v1127, %v1109
        %v1136 = vadd.f32 %v1128, %v1111
        %v1137 = vadd.f32 %v1129, %v1113
        %v1138 = vadd.f32 %v1130, %v1115
        %v1139 = vadd.f32 %v1131, %v1119
        %v1140 = vadd.f32 %v1132, %v1121
        %v1141 = vadd.f32 %v1133, %v1123
        %v1142 = vadd.f32 %v1134, %v1125
        %v1143 = vsel %vm737, %v1109, %v1135
        %v1144 = vsel %vm738, %v1111, %v1136
        %v1145 = vsel %vm739, %v1113, %v1137
        %v1146 = vsel %vm740, %v1115, %v1138
        %v1147 = vsel %vm741, %v1119, %v1139
        %v1148 = vsel %vm742, %v1121, %v1140
        %v1149 = vsel %vm743, %v1123, %v1141
        %v1150 = vsel %vm744, %v1125, %v1142
        %vm1151 = vcmp.gt.f32.partialorder %v1143, 0.5
        %vm1152 = vcmp.gt.f32.partialorder %v1144, 0.5
        %vm1153 = vcmp.gt.f32.partialorder %v1145, 0.5
        %vm1154 = vcmp.gt.f32.partialorder %v1146, 0.5
        %vm1155 = vcmp.gt.f32.partialorder %v1147, 0.5
        %vm1156 = vcmp.gt.f32.partialorder %v1148, 0.5
        %vm1157 = vcmp.gt.f32.partialorder %v1149, 0.5
        %vm1158 = vcmp.gt.f32.partialorder %v1150, 0.5
        %v1159 = vsel %vm1151, 1, 0
        %v1160 = vsel %vm1152, 1, 0
        %v1161 = vsel %vm1153, 1, 0
        %v1162 = vsel %vm1154, 1, 0
        %v1163 = vsel %vm1155, 1, 0
        %v1164 = vsel %vm1156, 1, 0
        %v1165 = vsel %vm1157, 1, 0
        %v1166 = vsel %vm1158, 1, 0
        %v1167 = vcvt.s32.f32 %v1159
        %v1168 = vcvt.s32.f32 %v1160
        %v1169 = vcvt.s32.f32 %v1161
        %v1170 = vcvt.s32.f32 %v1162
        %v1171 = vcvt.s32.f32 %v1163
        %v1172 = vcvt.s32.f32 %v1164
        %v1173 = vcvt.s32.f32 %v1165
        %v1174 = vcvt.s32.f32 %v1166
        %v1175 = vpack.c.bf16 %v1169, %v1167
        %v1176 = vpack.c.bf16 %v1170, %v1168
        %v1177 = vpack.c.bf16 %v1173, %v1171
        %v1178 = vpack.c.bf16 %v1174, %v1172
        %v1183 = vunpack.c.l.b16 %v1175
        %v1184 = vunpack.c.l.b16 %v1176
        %v1185 = vunpack.c.h.b16 %v1175
        %v1186 = vunpack.c.h.b16 %v1176
        %v1187 = vunpack.c.l.b16 %v1177
        %v1188 = vunpack.c.l.b16 %v1178
        %v1189 = vunpack.c.h.b16 %v1177
        %v1190 = vunpack.c.h.b16 %v1178
        %v1191 = vpack.c.b16 %v1184, %v1183
        %v1192 = vpack.c.b16 %v1186, %v1185
        %v1193 = vpack.c.b16 %v1188, %v1187
        %v1194 = vpack.c.b16 %v1190, %v1189
        %s1199 = scalar_lea.vmem %s307, 32 [#allocation8]
        %1200 = vst [vmem:[%s1199] sm:$0xff] %v1191
        %1201 = vst [vmem:[%s1199 + $0x8] sm:$0xff] %v1192
        %1202 = vst [vmem:[%s1199 + $0x10] sm:$0xff] %v1193
        %1203 = vst [vmem:[%s1199 + $0x18] sm:$0xff] %v1194
        %s1204 = scalar_lea.vmem %s271, 64 [#allocation2]
        %v1205 = vld [vmem:[%s1204] sm:$0xff]
        %v1206 = vld [vmem:[%s1204 + $0x8] sm:$0xff]
        %v1207 = vld [vmem:[%s1204 + $0x10] sm:$0xff]
        %v1208 = vld [vmem:[%s1204 + $0x18] sm:$0xff]
        %v1213 = vunpack.c.l.b16 %v1205
        %v1214 = vunpack.c.h.b16 %v1205
        %v1215 = vunpack.c.l.b16 %v1206
        %v1216 = vunpack.c.h.b16 %v1206
        %v1217 = vunpack.c.l.b16 %v1207
        %v1218 = vunpack.c.h.b16 %v1207
        %v1219 = vunpack.c.l.b16 %v1208
        %v1220 = vunpack.c.h.b16 %v1208
        %v1221 = vpack.c.b16 %v1215, %v1213
        %v1222 = vpack.c.b16 %v1216, %v1214
        %v1223 = vpack.c.b16 %v1219, %v1217
        %v1224 = vpack.c.b16 %v1220, %v1218
        %1229 = vmatprep.subr.bf16.mxu0 %v1222
        %1230 = vmatpush1.bf16.msra.mxu0 %v1221
        %1231 = vmatprep.subr.bf16.mxu0 %v1224
        %1232 = vmatpush1.bf16.msra.mxu0 %v1223
        %1233 = vmatprep.subr.bf16.mxu0 0
        %1234 = vmatpush1.bf16.msra.mxu0 0
        %1235 = vmatprep.subr.bf16.mxu0 0
        %1236 = vmatpush1.bf16.msra.mxu0 0
        %1237 = vmatprep.subr.bf16.mxu0 0
        %1238 = vmatpush1.bf16.msra.mxu0 0
        %1239 = vmatprep.subr.bf16.mxu0 0
        %1240 = vmatpush1.bf16.msra.mxu0 0
        %1241 = vmatprep.subr.bf16.mxu0 0
        %1242 = vmatpush1.bf16.msra.mxu0 0
        %1243 = vmatprep.subr.bf16.mxu0 0
        %1244 = vmatpush1.bf16.msra.mxu0 0
        %1245 = vmatprep.subr.bf16.mxu0 0
        %1246 = vmatpush1.bf16.msra.mxu0 0
        %1247 = vmatprep.subr.bf16.mxu0 0
        %1248 = vmatpush1.bf16.msra.mxu0 0
        %1249 = vmatprep.subr.bf16.mxu0 0
        %1250 = vmatpush1.bf16.msra.mxu0 0
        %1251 = vmatprep.subr.bf16.mxu0 0
        %1252 = vmatpush1.bf16.msra.mxu0 0
        %1253 = vmatprep.subr.bf16.mxu0 0
        %1254 = vmatpush1.bf16.msra.mxu0 0
        %1255 = vmatprep.subr.bf16.mxu0 0
        %1256 = vmatpush1.bf16.msra.mxu0 0
        %1257 = vmatprep.subr.bf16.mxu0 0
        %1258 = vmatpush1.bf16.msra.mxu0 0
        %1259 = vmatprep.subr.bf16.mxu0 0
        %1260 = vmatpush1.bf16.msra.mxu0 0
        %1261 = vmatprep.mubr.bf16.mxu0 0
        %1262 = vmatmul.mubr.bf16.gmra.mrb[0].mxu0 %v397
        %v1263 = vpop.f32.mrb[0].mxu0
        %v1264 = vadd.f32 %v348, %v1263
        %v1265 = vpop.f32.mrb[0].mxu0
        %v1266 = vadd.f32 %v348, %v1265
        %v1267 = vpop.f32.mrb[0].mxu0
        %v1268 = vadd.f32 %v353, %v1267
        %v1269 = vpop.f32.mrb[0].mxu0
        %v1270 = vadd.f32 %v353, %v1269
        %1271 = vmatprep.mubr.bf16.mxu0 0
        %1272 = vmatmul.mubr.bf16.gmra.mrb[0].mxu0 %v400
        %v1273 = vpop.f32.mrb[0].mxu0
        %v1274 = vadd.f32 %v358, %v1273
        %v1275 = vpop.f32.mrb[0].mxu0
        %v1276 = vadd.f32 %v358, %v1275
        %v1277 = vpop.f32.mrb[0].mxu0
        %v1278 = vadd.f32 %v363, %v1277
        %v1279 = vpop.f32.mrb[0].mxu0
        %v1280 = vadd.f32 %v363, %v1279
        %1281 = vdwg.mxu0
        %v1282 = vmul.f32 %v883, 0.25
        %v1283 = vmul.f32 %v884, 0.25
        %v1284 = vmul.f32 %v885, 0.25
        %v1285 = vmul.f32 %v886, 0.25
        %v1286 = vmul.f32 %v887, 0.25
        %v1287 = vmul.f32 %v888, 0.25
        %v1288 = vmul.f32 %v889, 0.25
        %v1289 = vmul.f32 %v890, 0.25
        %v1290 = vadd.f32 %v1282, %v1264
        %v1291 = vadd.f32 %v1283, %v1266
        %v1292 = vadd.f32 %v1284, %v1268
        %v1293 = vadd.f32 %v1285, %v1270
        %v1294 = vadd.f32 %v1286, %v1274
        %v1295 = vadd.f32 %v1287, %v1276
        %v1296 = vadd.f32 %v1288, %v1278
        %v1297 = vadd.f32 %v1289, %v1280
        %v1298 = vsel %vm891, %v1264, %v1290
        %v1299 = vsel %vm892, %v1266, %v1291
        %v1300 = vsel %vm893, %v1268, %v1292
        %v1301 = vsel %vm894, %v1270, %v1293
        %v1302 = vsel %vm895, %v1274, %v1294
        %v1303 = vsel %vm896, %v1276, %v1295
        %v1304 = vsel %vm897, %v1278, %v1296
        %v1305 = vsel %vm898, %v1280, %v1297
        %vm1306 = vcmp.gt.f32.partialorder %v1298, 0.5
        %vm1307 = vcmp.gt.f32.partialorder %v1299, 0.5
        %vm1308 = vcmp.gt.f32.partialorder %v1300, 0.5
        %vm1309 = vcmp.gt.f32.partialorder %v1301, 0.5
        %vm1310 = vcmp.gt.f32.partialorder %v1302, 0.5
        %vm1311 = vcmp.gt.f32.partialorder %v1303, 0.5
        %vm1312 = vcmp.gt.f32.partialorder %v1304, 0.5
        %vm1313 = vcmp.gt.f32.partialorder %v1305, 0.5
        %v1314 = vsel %vm1306, 1, 0
        %v1315 = vsel %vm1307, 1, 0
        %v1316 = vsel %vm1308, 1, 0
        %v1317 = vsel %vm1309, 1, 0
        %v1318 = vsel %vm1310, 1, 0
        %v1319 = vsel %vm1311, 1, 0
        %v1320 = vsel %vm1312, 1, 0
        %v1321 = vsel %vm1313, 1, 0
        %v1322 = vcvt.s32.f32 %v1314
        %v1323 = vcvt.s32.f32 %v1315
        %v1324 = vcvt.s32.f32 %v1316
        %v1325 = vcvt.s32.f32 %v1317
        %v1326 = vcvt.s32.f32 %v1318
        %v1327 = vcvt.s32.f32 %v1319
        %v1328 = vcvt.s32.f32 %v1320
        %v1329 = vcvt.s32.f32 %v1321
        %v1330 = vpack.c.bf16 %v1324, %v1322
        %v1331 = vpack.c.bf16 %v1325, %v1323
        %v1332 = vpack.c.bf16 %v1328, %v1326
        %v1333 = vpack.c.bf16 %v1329, %v1327
        %v1338 = vunpack.c.l.b16 %v1330
        %v1339 = vunpack.c.l.b16 %v1331
        %v1340 = vunpack.c.h.b16 %v1330
        %v1341 = vunpack.c.h.b16 %v1331
        %v1342 = vunpack.c.l.b16 %v1332
        %v1343 = vunpack.c.l.b16 %v1333
        %v1344 = vunpack.c.h.b16 %v1332
        %v1345 = vunpack.c.h.b16 %v1333
        %v1346 = vpack.c.b16 %v1339, %v1338
        %v1347 = vpack.c.b16 %v1341, %v1340
        %v1348 = vpack.c.b16 %v1343, %v1342
        %v1349 = vpack.c.b16 %v1345, %v1344
        %s1354 = scalar_lea.vmem %s293, 64 [#allocation5]
        %1355 = vst [vmem:[%s1354] sm:$0xff] %v1346
        %1356 = vst [vmem:[%s1354 + $0x8] sm:$0xff] %v1347
        %1357 = vst [vmem:[%s1354 + $0x10] sm:$0xff] %v1348
        %1358 = vst [vmem:[%s1354 + $0x18] sm:$0xff] %v1349
        %1359 = vmatprep.subr.bf16.mxu0 %v1222
        %1360 = vmatpush1.bf16.msra.mxu0 %v1221
        %1361 = vmatprep.subr.bf16.mxu0 %v1224
        %1362 = vmatpush1.bf16.msra.mxu0 %v1223
        %1363 = vmatprep.subr.bf16.mxu0 0
        %1364 = vmatpush1.bf16.msra.mxu0 0
        %1365 = vmatprep.subr.bf16.mxu0 0
        %1366 = vmatpush1.bf16.msra.mxu0 0
        %1367 = vmatprep.subr.bf16.mxu0 0
        %1368 = vmatpush1.bf16.msra.mxu0 0
        %1369 = vmatprep.subr.bf16.mxu0 0
        %1370 = vmatpush1.bf16.msra.mxu0 0
        %1371 = vmatprep.subr.bf16.mxu0 0
        %1372 = vmatpush1.bf16.msra.mxu0 0
        %1373 = vmatprep.subr.bf16.mxu0 0
        %1374 = vmatpush1.bf16.msra.mxu0 0
        %1375 = vmatprep.subr.bf16.mxu0 0
        %1376 = vmatpush1.bf16.msra.mxu0 0
        %1377 = vmatprep.subr.bf16.mxu0 0
        %1378 = vmatpush1.bf16.msra.mxu0 0
        %1379 = vmatprep.subr.bf16.mxu0 0
        %1380 = vmatpush1.bf16.msra.mxu0 0
        %1381 = vmatprep.subr.bf16.mxu0 0
        %1382 = vmatpush1.bf16.msra.mxu0 0
        %1383 = vmatprep.subr.bf16.mxu0 0
        %1384 = vmatpush1.bf16.msra.mxu0 0
        %1385 = vmatprep.subr.bf16.mxu0 0
        %1386 = vmatpush1.bf16.msra.mxu0 0
        %1387 = vmatprep.subr.bf16.mxu0 0
        %1388 = vmatpush1.bf16.msra.mxu0 0
        %1389 = vmatprep.subr.bf16.mxu0 0
        %1390 = vmatpush1.bf16.msra.mxu0 0
        %1391 = vmatprep.mubr.bf16.mxu0 0
        %1392 = vmatmul.mubr.bf16.gmra.mrb[0].mxu0 %v538
        %v1393 = vpop.f32.mrb[0].mxu0
        %v1394 = vadd.f32 %v510, %v1393
        %v1395 = vpop.f32.mrb[0].mxu0
        %v1396 = vadd.f32 %v510, %v1395
        %v1397 = vpop.f32.mrb[0].mxu0
        %v1398 = vadd.f32 %v515, %v1397
        %v1399 = vpop.f32.mrb[0].mxu0
        %v1400 = vadd.f32 %v515, %v1399
        %1401 = vmatprep.mubr.bf16.mxu0 0
        %1402 = vmatmul.mubr.bf16.gmra.mrb[0].mxu0 %v541
        %v1403 = vpop.f32.mrb[0].mxu0
        %v1404 = vadd.f32 %v520, %v1403
        %v1405 = vpop.f32.mrb[0].mxu0
        %v1406 = vadd.f32 %v520, %v1405
        %v1407 = vpop.f32.mrb[0].mxu0
        %v1408 = vadd.f32 %v525, %v1407
        %v1409 = vpop.f32.mrb[0].mxu0
        %v1410 = vadd.f32 %v525, %v1409
        %1411 = vdwg.mxu0
        %v1412 = vmul.f32 %v1013, 0.25
        %v1413 = vmul.f32 %v1014, 0.25
        %v1414 = vmul.f32 %v1015, 0.25
        %v1415 = vmul.f32 %v1016, 0.25
        %v1416 = vmul.f32 %v1017, 0.25
        %v1417 = vmul.f32 %v1018, 0.25
        %v1418 = vmul.f32 %v1019, 0.25
        %v1419 = vmul.f32 %v1020, 0.25
        %v1420 = vadd.f32 %v1412, %v1394
        %v1421 = vadd.f32 %v1413, %v1396
        %v1422 = vadd.f32 %v1414, %v1398
        %v1423 = vadd.f32 %v1415, %v1400
        %v1424 = vadd.f32 %v1416, %v1404
        %v1425 = vadd.f32 %v1417, %v1406
        %v1426 = vadd.f32 %v1418, %v1408
        %v1427 = vadd.f32 %v1419, %v1410
        %v1428 = vsel %vm1021, %v1394, %v1420
        %v1429 = vsel %vm1022, %v1396, %v1421
        %v1430 = vsel %vm1023, %v1398, %v1422
        %v1431 = vsel %vm1024, %v1400, %v1423
        %v1432 = vsel %vm1025, %v1404, %v1424
        %v1433 = vsel %vm1026, %v1406, %v1425
        %v1434 = vsel %vm1027, %v1408, %v1426
        %v1435 = vsel %vm1028, %v1410, %v1427
        %vm1436 = vcmp.gt.f32.partialorder %v1428, 0.5
        %vm1437 = vcmp.gt.f32.partialorder %v1429, 0.5
        %vm1438 = vcmp.gt.f32.partialorder %v1430, 0.5
        %vm1439 = vcmp.gt.f32.partialorder %v1431, 0.5
        %vm1440 = vcmp.gt.f32.partialorder %v1432, 0.5
        %vm1441 = vcmp.gt.f32.partialorder %v1433, 0.5
        %vm1442 = vcmp.gt.f32.partialorder %v1434, 0.5
        %vm1443 = vcmp.gt.f32.partialorder %v1435, 0.5
        %v1444 = vsel %vm1436, 1, 0
        %v1445 = vsel %vm1437, 1, 0
        %v1446 = vsel %vm1438, 1, 0
        %v1447 = vsel %vm1439, 1, 0
        %v1448 = vsel %vm1440, 1, 0
        %v1449 = vsel %vm1441, 1, 0
        %v1450 = vsel %vm1442, 1, 0
        %v1451 = vsel %vm1443, 1, 0
        %v1452 = vcvt.s32.f32 %v1444
        %v1453 = vcvt.s32.f32 %v1445
        %v1454 = vcvt.s32.f32 %v1446
        %v1455 = vcvt.s32.f32 %v1447
        %v1456 = vcvt.s32.f32 %v1448
        %v1457 = vcvt.s32.f32 %v1449
        %v1458 = vcvt.s32.f32 %v1450
        %v1459 = vcvt.s32.f32 %v1451
        %v1460 = vpack.c.bf16 %v1454, %v1452
        %v1461 = vpack.c.bf16 %v1455, %v1453
        %v1462 = vpack.c.bf16 %v1458, %v1456
        %v1463 = vpack.c.bf16 %v1459, %v1457
        %v1468 = vunpack.c.l.b16 %v1460
        %v1469 = vunpack.c.l.b16 %v1461
        %v1470 = vunpack.c.h.b16 %v1460
        %v1471 = vunpack.c.h.b16 %v1461
        %v1472 = vunpack.c.l.b16 %v1462
        %v1473 = vunpack.c.l.b16 %v1463
        %v1474 = vunpack.c.h.b16 %v1462
        %v1475 = vunpack.c.h.b16 %v1463
        %v1476 = vpack.c.b16 %v1469, %v1468
        %v1477 = vpack.c.b16 %v1471, %v1470
        %v1478 = vpack.c.b16 %v1473, %v1472
        %v1479 = vpack.c.b16 %v1475, %v1474
        %s1484 = scalar_lea.vmem %s300, 64 [#allocation6]
        %1485 = vst [vmem:[%s1484] sm:$0xff] %v1476
        %1486 = vst [vmem:[%s1484 + $0x8] sm:$0xff] %v1477
        %1487 = vst [vmem:[%s1484 + $0x10] sm:$0xff] %v1478
        %1488 = vst [vmem:[%s1484 + $0x18] sm:$0xff] %v1479
        %1489 = vmatprep.subr.bf16.mxu0 %v1222
        %1490 = vmatpush1.bf16.msra.mxu0 %v1221
        %1491 = vmatprep.subr.bf16.mxu0 %v1224
        %1492 = vmatpush1.bf16.msra.mxu0 %v1223
        %1493 = vmatprep.subr.bf16.mxu0 0
        %1494 = vmatpush1.bf16.msra.mxu0 0
        %1495 = vmatprep.subr.bf16.mxu0 0
        %1496 = vmatpush1.bf16.msra.mxu0 0
        %1497 = vmatprep.subr.bf16.mxu0 0
        %1498 = vmatpush1.bf16.msra.mxu0 0
        %1499 = vmatprep.subr.bf16.mxu0 0
        %1500 = vmatpush1.bf16.msra.mxu0 0
        %1501 = vmatprep.subr.bf16.mxu0 0
        %1502 = vmatpush1.bf16.msra.mxu0 0
        %1503 = vmatprep.subr.bf16.mxu0 0
        %1504 = vmatpush1.bf16.msra.mxu0 0
        %1505 = vmatprep.subr.bf16.mxu0 0
        %1506 = vmatpush1.bf16.msra.mxu0 0
        %1507 = vmatprep.subr.bf16.mxu0 0
        %1508 = vmatpush1.bf16.msra.mxu0 0
        %1509 = vmatprep.subr.bf16.mxu0 0
        %1510 = vmatpush1.bf16.msra.mxu0 0
        %1511 = vmatprep.subr.bf16.mxu0 0
        %1512 = vmatpush1.bf16.msra.mxu0 0
        %1513 = vmatprep.subr.bf16.mxu0 0
        %1514 = vmatpush1.bf16.msra.mxu0 0
        %1515 = vmatprep.subr.bf16.mxu0 0
        %1516 = vmatpush1.bf16.msra.mxu0 0
        %1517 = vmatprep.subr.bf16.mxu0 0
        %1518 = vmatpush1.bf16.msra.mxu0 0
        %1519 = vmatprep.subr.bf16.mxu0 0
        %1520 = vmatpush1.bf16.msra.mxu0 0
        %1521 = vmatprep.mubr.bf16.mxu0 0
        %1522 = vmatmul.mubr.bf16.gmra.mrb[0].mxu0 %v679
        %v1523 = vpop.f32.mrb[0].mxu0
        %v1524 = vadd.f32 %v651, %v1523
        %v1525 = vpop.f32.mrb[0].mxu0
        %v1526 = vadd.f32 %v651, %v1525
        %v1527 = vpop.f32.mrb[0].mxu0
        %v1528 = vadd.f32 %v656, %v1527
        %v1529 = vpop.f32.mrb[0].mxu0
        %v1530 = vadd.f32 %v656, %v1529
        %1531 = vmatprep.mubr.bf16.mxu0 0
        %1532 = vmatmul.mubr.bf16.gmra.mrb[0].mxu0 %v682
        %v1533 = vpop.f32.mrb[0].mxu0
        %v1534 = vadd.f32 %v661, %v1533
        %v1535 = vpop.f32.mrb[0].mxu0
        %v1536 = vadd.f32 %v661, %v1535
        %v1537 = vpop.f32.mrb[0].mxu0
        %v1538 = vadd.f32 %v666, %v1537
        %v1539 = vpop.f32.mrb[0].mxu0
        %v1540 = vadd.f32 %v666, %v1539
        %1541 = vdwg.mxu0
        %v1542 = vmul.f32 %v1143, 0.25
        %v1543 = vmul.f32 %v1144, 0.25
        %v1544 = vmul.f32 %v1145, 0.25
        %v1545 = vmul.f32 %v1146, 0.25
        %v1546 = vmul.f32 %v1147, 0.25
        %v1547 = vmul.f32 %v1148, 0.25
        %v1548 = vmul.f32 %v1149, 0.25
        %v1549 = vmul.f32 %v1150, 0.25
        %v1550 = vadd.f32 %v1542, %v1524
        %v1551 = vadd.f32 %v1543, %v1526
        %v1552 = vadd.f32 %v1544, %v1528
        %v1553 = vadd.f32 %v1545, %v1530
        %v1554 = vadd.f32 %v1546, %v1534
        %v1555 = vadd.f32 %v1547, %v1536
        %v1556 = vadd.f32 %v1548, %v1538
        %v1557 = vadd.f32 %v1549, %v1540
        %v1558 = vsel %vm1151, %v1524, %v1550
        %v1559 = vsel %vm1152, %v1526, %v1551
        %v1560 = vsel %vm1153, %v1528, %v1552
        %v1561 = vsel %vm1154, %v1530, %v1553
        %v1562 = vsel %vm1155, %v1534, %v1554
        %v1563 = vsel %vm1156, %v1536, %v1555
        %v1564 = vsel %vm1157, %v1538, %v1556
        %v1565 = vsel %vm1158, %v1540, %v1557
        %vm1566 = vcmp.gt.f32.partialorder %v1558, 0.5
        %vm1567 = vcmp.gt.f32.partialorder %v1559, 0.5
        %vm1568 = vcmp.gt.f32.partialorder %v1560, 0.5
        %vm1569 = vcmp.gt.f32.partialorder %v1561, 0.5
        %vm1570 = vcmp.gt.f32.partialorder %v1562, 0.5
        %vm1571 = vcmp.gt.f32.partialorder %v1563, 0.5
        %vm1572 = vcmp.gt.f32.partialorder %v1564, 0.5
        %vm1573 = vcmp.gt.f32.partialorder %v1565, 0.5
        %v1574 = vsel %vm1566, 1, 0
        %v1575 = vsel %vm1567, 1, 0
        %v1576 = vsel %vm1568, 1, 0
        %v1577 = vsel %vm1569, 1, 0
        %v1578 = vsel %vm1570, 1, 0
        %v1579 = vsel %vm1571, 1, 0
        %v1580 = vsel %vm1572, 1, 0
        %v1581 = vsel %vm1573, 1, 0
        %v1582 = vcvt.s32.f32 %v1574
        %v1583 = vcvt.s32.f32 %v1575
        %v1584 = vcvt.s32.f32 %v1576
        %v1585 = vcvt.s32.f32 %v1577
        %v1586 = vcvt.s32.f32 %v1578
        %v1587 = vcvt.s32.f32 %v1579
        %v1588 = vcvt.s32.f32 %v1580
        %v1589 = vcvt.s32.f32 %v1581
        %v1590 = vpack.c.bf16 %v1584, %v1582
        %v1591 = vpack.c.bf16 %v1585, %v1583
        %v1592 = vpack.c.bf16 %v1588, %v1586
        %v1593 = vpack.c.bf16 %v1589, %v1587
        %v1598 = vunpack.c.l.b16 %v1590
        %v1599 = vunpack.c.l.b16 %v1591
        %v1600 = vunpack.c.h.b16 %v1590
        %v1601 = vunpack.c.h.b16 %v1591
        %v1602 = vunpack.c.l.b16 %v1592
        %v1603 = vunpack.c.l.b16 %v1593
        %v1604 = vunpack.c.h.b16 %v1592
        %v1605 = vunpack.c.h.b16 %v1593
        %v1606 = vpack.c.b16 %v1599, %v1598
        %v1607 = vpack.c.b16 %v1601, %v1600
        %v1608 = vpack.c.b16 %v1603, %v1602
        %v1609 = vpack.c.b16 %v1605, %v1604
        %s1614 = scalar_lea.vmem %s307, 64 [#allocation8]
        %1615 = vst [vmem:[%s1614] sm:$0xff] %v1606
        %1616 = vst [vmem:[%s1614 + $0x8] sm:$0xff] %v1607
        %1617 = vst [vmem:[%s1614 + $0x10] sm:$0xff] %v1608
        %1618 = vst [vmem:[%s1614 + $0x18] sm:$0xff] %v1609
        %s1619 = scalar_lea.vmem %s271, 96 [#allocation2]
        %v1620 = vld [vmem:[%s1619] sm:$0xff]
        %v1621 = vld [vmem:[%s1619 + $0x8] sm:$0xff]
        %v1622 = vld [vmem:[%s1619 + $0x10] sm:$0xff]
        %v1623 = vld [vmem:[%s1619 + $0x18] sm:$0xff]
        %v1628 = vunpack.c.l.b16 %v1620
        %v1629 = vunpack.c.h.b16 %v1620
        %v1630 = vunpack.c.l.b16 %v1621
        %v1631 = vunpack.c.h.b16 %v1621
        %v1632 = vunpack.c.l.b16 %v1622
        %v1633 = vunpack.c.h.b16 %v1622
        %v1634 = vunpack.c.l.b16 %v1623
        %v1635 = vunpack.c.h.b16 %v1623
        %v1636 = vpack.c.b16 %v1630, %v1628
        %v1637 = vpack.c.b16 %v1631, %v1629
        %v1638 = vpack.c.b16 %v1634, %v1632
        %v1639 = vpack.c.b16 %v1635, %v1633
        %1644 = vmatprep.subr.bf16.mxu0 %v1637
        %1645 = vmatpush1.bf16.msra.mxu0 %v1636
        %1646 = vmatprep.subr.bf16.mxu0 %v1639
        %1647 = vmatpush1.bf16.msra.mxu0 %v1638
        %1648 = vmatprep.subr.bf16.mxu0 0
        %1649 = vmatpush1.bf16.msra.mxu0 0
        %1650 = vmatprep.subr.bf16.mxu0 0
        %1651 = vmatpush1.bf16.msra.mxu0 0
        %1652 = vmatprep.subr.bf16.mxu0 0
        %1653 = vmatpush1.bf16.msra.mxu0 0
        %1654 = vmatprep.subr.bf16.mxu0 0
        %1655 = vmatpush1.bf16.msra.mxu0 0
        %1656 = vmatprep.subr.bf16.mxu0 0
        %1657 = vmatpush1.bf16.msra.mxu0 0
        %1658 = vmatprep.subr.bf16.mxu0 0
        %1659 = vmatpush1.bf16.msra.mxu0 0
        %1660 = vmatprep.subr.bf16.mxu0 0
        %1661 = vmatpush1.bf16.msra.mxu0 0
        %1662 = vmatprep.subr.bf16.mxu0 0
        %1663 = vmatpush1.bf16.msra.mxu0 0
        %1664 = vmatprep.subr.bf16.mxu0 0
        %1665 = vmatpush1.bf16.msra.mxu0 0
        %1666 = vmatprep.subr.bf16.mxu0 0
        %1667 = vmatpush1.bf16.msra.mxu0 0
        %1668 = vmatprep.subr.bf16.mxu0 0
        %1669 = vmatpush1.bf16.msra.mxu0 0
        %1670 = vmatprep.subr.bf16.mxu0 0
        %1671 = vmatpush1.bf16.msra.mxu0 0
        %1672 = vmatprep.subr.bf16.mxu0 0
        %1673 = vmatpush1.bf16.msra.mxu0 0
        %1674 = vmatprep.subr.bf16.mxu0 0
        %1675 = vmatpush1.bf16.msra.mxu0 0
        %1676 = vmatprep.mubr.bf16.mxu0 0
        %1677 = vmatmul.mubr.bf16.gmra.mrb[0].mxu0 %v397
        %v1678 = vpop.f32.mrb[0].mxu0
        %v1679 = vadd.f32 %v348, %v1678
        %v1680 = vpop.f32.mrb[0].mxu0
        %v1681 = vadd.f32 %v348, %v1680
        %v1682 = vpop.f32.mrb[0].mxu0
        %v1683 = vadd.f32 %v353, %v1682
        %v1684 = vpop.f32.mrb[0].mxu0
        %v1685 = vadd.f32 %v353, %v1684
        %1686 = vmatprep.mubr.bf16.mxu0 0
        %1687 = vmatmul.mubr.bf16.gmra.mrb[0].mxu0 %v400
        %v1688 = vpop.f32.mrb[0].mxu0
        %v1689 = vadd.f32 %v358, %v1688
        %v1690 = vpop.f32.mrb[0].mxu0
        %v1691 = vadd.f32 %v358, %v1690
        %v1692 = vpop.f32.mrb[0].mxu0
        %v1693 = vadd.f32 %v363, %v1692
        %v1694 = vpop.f32.mrb[0].mxu0
        %v1695 = vadd.f32 %v363, %v1694
        %1696 = vdwg.mxu0
        %v1697 = vmul.f32 %v1298, 0.25
        %v1698 = vmul.f32 %v1299, 0.25
        %v1699 = vmul.f32 %v1300, 0.25
        %v1700 = vmul.f32 %v1301, 0.25
        %v1701 = vmul.f32 %v1302, 0.25
        %v1702 = vmul.f32 %v1303, 0.25
        %v1703 = vmul.f32 %v1304, 0.25
        %v1704 = vmul.f32 %v1305, 0.25
        %v1705 = vadd.f32 %v1697, %v1679
        %v1706 = vadd.f32 %v1698, %v1681
        %v1707 = vadd.f32 %v1699, %v1683
        %v1708 = vadd.f32 %v1700, %v1685
        %v1709 = vadd.f32 %v1701, %v1689
        %v1710 = vadd.f32 %v1702, %v1691
        %v1711 = vadd.f32 %v1703, %v1693
        %v1712 = vadd.f32 %v1704, %v1695
        %v1713 = vsel %vm1306, %v1679, %v1705
        %v1714 = vsel %vm1307, %v1681, %v1706
        %v1715 = vsel %vm1308, %v1683, %v1707
        %v1716 = vsel %vm1309, %v1685, %v1708
        %v1717 = vsel %vm1310, %v1689, %v1709
        %v1718 = vsel %vm1311, %v1691, %v1710
        %v1719 = vsel %vm1312, %v1693, %v1711
        %v1720 = vsel %vm1313, %v1695, %v1712
        %vm1721 = vcmp.gt.f32.partialorder %v1713, 0.5
        %vm1722 = vcmp.gt.f32.partialorder %v1714, 0.5
        %vm1723 = vcmp.gt.f32.partialorder %v1715, 0.5
        %vm1724 = vcmp.gt.f32.partialorder %v1716, 0.5
        %vm1725 = vcmp.gt.f32.partialorder %v1717, 0.5
        %vm1726 = vcmp.gt.f32.partialorder %v1718, 0.5
        %vm1727 = vcmp.gt.f32.partialorder %v1719, 0.5
        %vm1728 = vcmp.gt.f32.partialorder %v1720, 0.5
        %v1729 = vsel %vm1721, 1, 0
        %v1730 = vsel %vm1722, 1, 0
        %v1731 = vsel %vm1723, 1, 0
        %v1732 = vsel %vm1724, 1, 0
        %v1733 = vsel %vm1725, 1, 0
        %v1734 = vsel %vm1726, 1, 0
        %v1735 = vsel %vm1727, 1, 0
        %v1736 = vsel %vm1728, 1, 0
        %v1737 = vcvt.s32.f32 %v1729
        %v1738 = vcvt.s32.f32 %v1730
        %v1739 = vcvt.s32.f32 %v1731
        %v1740 = vcvt.s32.f32 %v1732
        %v1741 = vcvt.s32.f32 %v1733
        %v1742 = vcvt.s32.f32 %v1734
        %v1743 = vcvt.s32.f32 %v1735
        %v1744 = vcvt.s32.f32 %v1736
        %v1745 = vpack.c.bf16 %v1739, %v1737
        %v1746 = vpack.c.bf16 %v1740, %v1738
        %v1747 = vpack.c.bf16 %v1743, %v1741
        %v1748 = vpack.c.bf16 %v1744, %v1742
        %v1753 = vunpack.c.l.b16 %v1745
        %v1754 = vunpack.c.l.b16 %v1746
        %v1755 = vunpack.c.h.b16 %v1745
        %v1756 = vunpack.c.h.b16 %v1746
        %v1757 = vunpack.c.l.b16 %v1747
        %v1758 = vunpack.c.l.b16 %v1748
        %v1759 = vunpack.c.h.b16 %v1747
        %v1760 = vunpack.c.h.b16 %v1748
        %v1761 = vpack.c.b16 %v1754, %v1753
        %v1762 = vpack.c.b16 %v1756, %v1755
        %v1763 = vpack.c.b16 %v1758, %v1757
        %v1764 = vpack.c.b16 %v1760, %v1759
        %s1769 = scalar_lea.vmem %s293, 96 [#allocation5]
        %1770 = vst [vmem:[%s1769] sm:$0xff] %v1761
        %1771 = vst [vmem:[%s1769 + $0x8] sm:$0xff] %v1762
        %1772 = vst [vmem:[%s1769 + $0x10] sm:$0xff] %v1763
        %1773 = vst [vmem:[%s1769 + $0x18] sm:$0xff] %v1764
        %1774 = vmatprep.subr.bf16.mxu0 %v1637
        %1775 = vmatpush1.bf16.msra.mxu0 %v1636
        %1776 = vmatprep.subr.bf16.mxu0 %v1639
        %1777 = vmatpush1.bf16.msra.mxu0 %v1638
        %1778 = vmatprep.subr.bf16.mxu0 0
        %1779 = vmatpush1.bf16.msra.mxu0 0
        %1780 = vmatprep.subr.bf16.mxu0 0
        %1781 = vmatpush1.bf16.msra.mxu0 0
        %1782 = vmatprep.subr.bf16.mxu0 0
        %1783 = vmatpush1.bf16.msra.mxu0 0
        %1784 = vmatprep.subr.bf16.mxu0 0
        %1785 = vmatpush1.bf16.msra.mxu0 0
        %1786 = vmatprep.subr.bf16.mxu0 0
        %1787 = vmatpush1.bf16.msra.mxu0 0
        %1788 = vmatprep.subr.bf16.mxu0 0
        %1789 = vmatpush1.bf16.msra.mxu0 0
        %1790 = vmatprep.subr.bf16.mxu0 0
        %1791 = vmatpush1.bf16.msra.mxu0 0
        %1792 = vmatprep.subr.bf16.mxu0 0
        %1793 = vmatpush1.bf16.msra.mxu0 0
        %1794 = vmatprep.subr.bf16.mxu0 0
        %1795 = vmatpush1.bf16.msra.mxu0 0
        %1796 = vmatprep.subr.bf16.mxu0 0
        %1797 = vmatpush1.bf16.msra.mxu0 0
        %1798 = vmatprep.subr.bf16.mxu0 0
        %1799 = vmatpush1.bf16.msra.mxu0 0
        %1800 = vmatprep.subr.bf16.mxu0 0
        %1801 = vmatpush1.bf16.msra.mxu0 0
        %1802 = vmatprep.subr.bf16.mxu0 0
        %1803 = vmatpush1.bf16.msra.mxu0 0
        %1804 = vmatprep.subr.bf16.mxu0 0
        %1805 = vmatpush1.bf16.msra.mxu0 0
        %1806 = vmatprep.mubr.bf16.mxu0 0
        %1807 = vmatmul.mubr.bf16.gmra.mrb[0].mxu0 %v538
        %v1808 = vpop.f32.mrb[0].mxu0
        %v1809 = vadd.f32 %v510, %v1808
        %v1810 = vpop.f32.mrb[0].mxu0
        %v1811 = vadd.f32 %v510, %v1810
        %v1812 = vpop.f32.mrb[0].mxu0
        %v1813 = vadd.f32 %v515, %v1812
        %v1814 = vpop.f32.mrb[0].mxu0
        %v1815 = vadd.f32 %v515, %v1814
        %1816 = vmatprep.mubr.bf16.mxu0 0
        %1817 = vmatmul.mubr.bf16.gmra.mrb[0].mxu0 %v541
        %v1818 = vpop.f32.mrb[0].mxu0
        %v1819 = vadd.f32 %v520, %v1818
        %v1820 = vpop.f32.mrb[0].mxu0
        %v1821 = vadd.f32 %v520, %v1820
        %v1822 = vpop.f32.mrb[0].mxu0
        %v1823 = vadd.f32 %v525, %v1822
        %v1824 = vpop.f32.mrb[0].mxu0
        %v1825 = vadd.f32 %v525, %v1824
        %1826 = vdwg.mxu0
        %v1827 = vmul.f32 %v1428, 0.25
        %v1828 = vmul.f32 %v1429, 0.25
        %v1829 = vmul.f32 %v1430, 0.25
        %v1830 = vmul.f32 %v1431, 0.25
        %v1831 = vmul.f32 %v1432, 0.25
        %v1832 = vmul.f32 %v1433, 0.25
        %v1833 = vmul.f32 %v1434, 0.25
        %v1834 = vmul.f32 %v1435, 0.25
        %v1835 = vadd.f32 %v1827, %v1809
        %v1836 = vadd.f32 %v1828, %v1811
        %v1837 = vadd.f32 %v1829, %v1813
        %v1838 = vadd.f32 %v1830, %v1815
        %v1839 = vadd.f32 %v1831, %v1819
        %v1840 = vadd.f32 %v1832, %v1821
        %v1841 = vadd.f32 %v1833, %v1823
        %v1842 = vadd.f32 %v1834, %v1825
        %v1843 = vsel %vm1436, %v1809, %v1835
        %v1844 = vsel %vm1437, %v1811, %v1836
        %v1845 = vsel %vm1438, %v1813, %v1837
        %v1846 = vsel %vm1439, %v1815, %v1838
        %v1847 = vsel %vm1440, %v1819, %v1839
        %v1848 = vsel %vm1441, %v1821, %v1840
        %v1849 = vsel %vm1442, %v1823, %v1841
        %v1850 = vsel %vm1443, %v1825, %v1842
        %vm1851 = vcmp.gt.f32.partialorder %v1843, 0.5
        %vm1852 = vcmp.gt.f32.partialorder %v1844, 0.5
        %vm1853 = vcmp.gt.f32.partialorder %v1845, 0.5
        %vm1854 = vcmp.gt.f32.partialorder %v1846, 0.5
        %vm1855 = vcmp.gt.f32.partialorder %v1847, 0.5
        %vm1856 = vcmp.gt.f32.partialorder %v1848, 0.5
        %vm1857 = vcmp.gt.f32.partialorder %v1849, 0.5
        %vm1858 = vcmp.gt.f32.partialorder %v1850, 0.5
        %v1859 = vsel %vm1851, 1, 0
        %v1860 = vsel %vm1852, 1, 0
        %v1861 = vsel %vm1853, 1, 0
        %v1862 = vsel %vm1854, 1, 0
        %v1863 = vsel %vm1855, 1, 0
        %v1864 = vsel %vm1856, 1, 0
        %v1865 = vsel %vm1857, 1, 0
        %v1866 = vsel %vm1858, 1, 0
        %v1867 = vcvt.s32.f32 %v1859
        %v1868 = vcvt.s32.f32 %v1860
        %v1869 = vcvt.s32.f32 %v1861
        %v1870 = vcvt.s32.f32 %v1862
        %v1871 = vcvt.s32.f32 %v1863
        %v1872 = vcvt.s32.f32 %v1864
        %v1873 = vcvt.s32.f32 %v1865
        %v1874 = vcvt.s32.f32 %v1866
        %v1875 = vpack.c.bf16 %v1869, %v1867
        %v1876 = vpack.c.bf16 %v1870, %v1868
        %v1877 = vpack.c.bf16 %v1873, %v1871
        %v1878 = vpack.c.bf16 %v1874, %v1872
        %v1883 = vunpack.c.l.b16 %v1875
        %v1884 = vunpack.c.l.b16 %v1876
        %v1885 = vunpack.c.h.b16 %v1875
        %v1886 = vunpack.c.h.b16 %v1876
        %v1887 = vunpack.c.l.b16 %v1877
        %v1888 = vunpack.c.l.b16 %v1878
        %v1889 = vunpack.c.h.b16 %v1877
        %v1890 = vunpack.c.h.b16 %v1878
        %v1891 = vpack.c.b16 %v1884, %v1883
        %v1892 = vpack.c.b16 %v1886, %v1885
        %v1893 = vpack.c.b16 %v1888, %v1887
        %v1894 = vpack.c.b16 %v1890, %v1889
        %s1899 = scalar_lea.vmem %s300, 96 [#allocation6]
        %1900 = vst [vmem:[%s1899] sm:$0xff] %v1891
        %1901 = vst [vmem:[%s1899 + $0x8] sm:$0xff] %v1892
        %1902 = vst [vmem:[%s1899 + $0x10] sm:$0xff] %v1893
        %1903 = vst [vmem:[%s1899 + $0x18] sm:$0xff] %v1894
        %1904 = vmatprep.subr.bf16.mxu0 %v1637
        %1905 = vmatpush1.bf16.msra.mxu0 %v1636
        %1906 = vmatprep.subr.bf16.mxu0 %v1639
        %1907 = vmatpush1.bf16.msra.mxu0 %v1638
        %1908 = vmatprep.subr.bf16.mxu0 0
        %1909 = vmatpush1.bf16.msra.mxu0 0
        %1910 = vmatprep.subr.bf16.mxu0 0
        %1911 = vmatpush1.bf16.msra.mxu0 0
        %1912 = vmatprep.subr.bf16.mxu0 0
        %1913 = vmatpush1.bf16.msra.mxu0 0
        %1914 = vmatprep.subr.bf16.mxu0 0
        %1915 = vmatpush1.bf16.msra.mxu0 0
        %1916 = vmatprep.subr.bf16.mxu0 0
        %1917 = vmatpush1.bf16.msra.mxu0 0
        %1918 = vmatprep.subr.bf16.mxu0 0
        %1919 = vmatpush1.bf16.msra.mxu0 0
        %1920 = vmatprep.subr.bf16.mxu0 0
        %1921 = vmatpush1.bf16.msra.mxu0 0
        %1922 = vmatprep.subr.bf16.mxu0 0
        %1923 = vmatpush1.bf16.msra.mxu0 0
        %1924 = vmatprep.subr.bf16.mxu0 0
        %1925 = vmatpush1.bf16.msra.mxu0 0
        %1926 = vmatprep.subr.bf16.mxu0 0
        %1927 = vmatpush1.bf16.msra.mxu0 0
        %1928 = vmatprep.subr.bf16.mxu0 0
        %1929 = vmatpush1.bf16.msra.mxu0 0
        %1930 = vmatprep.subr.bf16.mxu0 0
        %1931 = vmatpush1.bf16.msra.mxu0 0
        %1932 = vmatprep.subr.bf16.mxu0 0
        %1933 = vmatpush1.bf16.msra.mxu0 0
        %1934 = vmatprep.subr.bf16.mxu0 0
        %1935 = vmatpush1.bf16.msra.mxu0 0
        %1936 = vmatprep.mubr.bf16.mxu0 0
        %1937 = vmatmul.mubr.bf16.gmra.mrb[0].mxu0 %v679
        %v1938 = vpop.f32.mrb[0].mxu0
        %v1939 = vadd.f32 %v651, %v1938
        %v1940 = vpop.f32.mrb[0].mxu0
        %v1941 = vadd.f32 %v651, %v1940
        %v1942 = vpop.f32.mrb[0].mxu0
        %v1943 = vadd.f32 %v656, %v1942
        %v1944 = vpop.f32.mrb[0].mxu0
        %v1945 = vadd.f32 %v656, %v1944
        %1946 = vmatprep.mubr.bf16.mxu0 0
        %1947 = vmatmul.mubr.bf16.gmra.mrb[0].mxu0 %v682
        %v1948 = vpop.f32.mrb[0].mxu0
        %v1949 = vadd.f32 %v661, %v1948
        %v1950 = vpop.f32.mrb[0].mxu0
        %v1951 = vadd.f32 %v661, %v1950
        %v1952 = vpop.f32.mrb[0].mxu0
        %v1953 = vadd.f32 %v666, %v1952
        %v1954 = vpop.f32.mrb[0].mxu0
        %v1955 = vadd.f32 %v666, %v1954
        %1956 = vdwg.mxu0
        %v1957 = vmul.f32 %v1558, 0.25
        %v1958 = vmul.f32 %v1559, 0.25
        %v1959 = vmul.f32 %v1560, 0.25
        %v1960 = vmul.f32 %v1561, 0.25
        %v1961 = vmul.f32 %v1562, 0.25
        %v1962 = vmul.f32 %v1563, 0.25
        %v1963 = vmul.f32 %v1564, 0.25
        %v1964 = vmul.f32 %v1565, 0.25
        %v1965 = vadd.f32 %v1957, %v1939
        %v1966 = vadd.f32 %v1958, %v1941
        %v1967 = vadd.f32 %v1959, %v1943
        %v1968 = vadd.f32 %v1960, %v1945
        %v1969 = vadd.f32 %v1961, %v1949
        %v1970 = vadd.f32 %v1962, %v1951
        %v1971 = vadd.f32 %v1963, %v1953
        %v1972 = vadd.f32 %v1964, %v1955
        %v1973 = vsel %vm1566, %v1939, %v1965
        %v1974 = vsel %vm1567, %v1941, %v1966
        %v1975 = vsel %vm1568, %v1943, %v1967
        %v1976 = vsel %vm1569, %v1945, %v1968
        %v1977 = vsel %vm1570, %v1949, %v1969
        %v1978 = vsel %vm1571, %v1951, %v1970
        %v1979 = vsel %vm1572, %v1953, %v1971
        %v1980 = vsel %vm1573, %v1955, %v1972
        %vm1981 = vcmp.gt.f32.partialorder %v1973, 0.5
        %vm1982 = vcmp.gt.f32.partialorder %v1974, 0.5
        %vm1983 = vcmp.gt.f32.partialorder %v1975, 0.5
        %vm1984 = vcmp.gt.f32.partialorder %v1976, 0.5
        %vm1985 = vcmp.gt.f32.partialorder %v1977, 0.5
        %vm1986 = vcmp.gt.f32.partialorder %v1978, 0.5
        %vm1987 = vcmp.gt.f32.partialorder %v1979, 0.5
        %vm1988 = vcmp.gt.f32.partialorder %v1980, 0.5
        %v1989 = vsel %vm1981, 1, 0
        %v1990 = vsel %vm1982, 1, 0
        %v1991 = vsel %vm1983, 1, 0
        %v1992 = vsel %vm1984, 1, 0
        %v1993 = vsel %vm1985, 1, 0
        %v1994 = vsel %vm1986, 1, 0
        %v1995 = vsel %vm1987, 1, 0
        %v1996 = vsel %vm1988, 1, 0
        %v1997 = vcvt.s32.f32 %v1989
        %v1998 = vcvt.s32.f32 %v1990
        %v1999 = vcvt.s32.f32 %v1991
        %v2000 = vcvt.s32.f32 %v1992
        %v2001 = vcvt.s32.f32 %v1993
        %v2002 = vcvt.s32.f32 %v1994
        %v2003 = vcvt.s32.f32 %v1995
        %v2004 = vcvt.s32.f32 %v1996
        %v2005 = vpack.c.bf16 %v1999, %v1997
        %v2006 = vpack.c.bf16 %v2000, %v1998
        %v2007 = vpack.c.bf16 %v2003, %v2001
        %v2008 = vpack.c.bf16 %v2004, %v2002
        %v2013 = vunpack.c.l.b16 %v2005
        %v2014 = vunpack.c.l.b16 %v2006
        %v2015 = vunpack.c.h.b16 %v2005
        %v2016 = vunpack.c.h.b16 %v2006
        %v2017 = vunpack.c.l.b16 %v2007
        %v2018 = vunpack.c.l.b16 %v2008
        %v2019 = vunpack.c.h.b16 %v2007
        %v2020 = vunpack.c.h.b16 %v2008
        %v2021 = vpack.c.b16 %v2014, %v2013
        %v2022 = vpack.c.b16 %v2016, %v2015
        %v2023 = vpack.c.b16 %v2018, %v2017
        %v2024 = vpack.c.b16 %v2020, %v2019
        %s2029 = scalar_lea.vmem %s307, 96 [#allocation8]
        %2030 = vst [vmem:[%s2029] sm:$0xff] %v2021
        %2031 = vst [vmem:[%s2029 + $0x8] sm:$0xff] %v2022
        %2032 = vst [vmem:[%s2029 + $0x10] sm:$0xff] %v2023
        %2033 = vst [vmem:[%s2029 + $0x18] sm:$0xff] %v2024
        %s2034 = sand.u32 %s118, 1
        %s2035 = scalar_lea.sflag [#allocation4], %s2034
        %s2036 = sand.u32 %s118, 1
        %s2037 = smul.addr %s2036, 128
        %s2038 = scalar_lea.vmem [#allocation5], %s2037
        %s2039 = sand.u32 %s26, 1
        %s2040 = scalar_lea.sflag [#allocation7], %s2039
        %s2041 = sand.u32 %s146, 1
        %s2042 = smul.addr %s2041, 128
        %s2043 = scalar_lea.vmem [#allocation6], %s2042
        %s2044 = sand.u32 %s26, 1
        %s2045 = scalar_lea.sflag [#allocation7], %s2044
        %s2046 = sand.u32 %s174, 1
        %s2047 = smul.addr %s2046, 128
        %s2048 = scalar_lea.vmem [#allocation8], %s2047
        // Predicated region
        $region37: #{tpu_custom_call.1} parent=31 // pred_check
          %p2049 = pneg %p128
        $region38: #{tpu_custom_call.1} parent=31 // pred_check_branch
          %2051 = sbr.rel (%p2049) target = $region40
        $region39: #{tpu_custom_call.1} parent=31 // pred_region
          #allocation12 [shape = 'u32[6]{0}', space=smem, size = 0x18, scoped, tag = 'DMA stride descriptor']
          %s2052 = smul.u32 2, %s31
          %s2054 = ssub.s32 2048, 2048
          %2055 = vsyncadd %s2035, %s2054
          %s2056 = smul.addr %s30, 8
          %s2057 = sadd.s32 %s2052, %s2056
          %s2058 = smul.addr %s2057, 64
          %s2059 = scalar_lea.hbm %s3, %s2058
          %s2061 = sshll.u32 1, 14
          %s2062 = sxor.u32 4294967295, %s2061
          %s2065 = sshll.u32 7, 18
          %s2066 = sxor.u32 4294967295, %s2065
          %s2067 = sand.u32 0, %s2066
          %s2069 = sor.u32 %s2067, 0
          %s2071 = sshll.u32 3, 24
          %s2072 = sxor.u32 4294967295, %s2071
          %s2073 = sand.u32 %s2069, %s2072
          %s2075 = sor.u32 %s2073, 0
          %s2076 = sshll.u32 %s2038, 4
          %s2077 = int_to_ptr.vmem [resolvable:$true] %s2076
          %2083 = sst [smem:[#allocation12]] 512
          %s2084 = scalar_lea.smem [#allocation12], 1
          %2085 = sst [smem:[%s2084]] 1024
          %s2086 = scalar_lea.smem [#allocation12], 2
          %2087 = sst [smem:[%s2086]] 4
          %s2088 = scalar_lea.smem [#allocation12], 3
          %2089 = sst [smem:[%s2088]] 128
          %s2090 = scalar_lea.smem [#allocation12], 4
          %2091 = sst [smem:[%s2090]] 128
          %s2092 = scalar_lea.smem [#allocation12], 5
          %2093 = sst [smem:[%s2092]] 8
          %2095 = dma.general %s2077, 2048, %s2059, %s2035, [#allocation11], [#allocation12], %s2075, 0
        $region40: #{tpu_custom_call.1} parent=31 // pred_fallthru
          _
        // Predicated region
        $region41: #{tpu_custom_call.1} parent=31 // pred_check
          %p2096 = pneg %p156
        $region42: #{tpu_custom_call.1} parent=31 // pred_check_branch
          %2098 = sbr.rel (%p2096) target = $region44
        $region43: #{tpu_custom_call.1} parent=31 // pred_region
          #allocation14 [shape = 'u32[6]{0}', space=smem, size = 0x18, scoped, tag = 'DMA stride descriptor']
          %s2099 = smul.u32 2, %s31
          %s2101 = ssub.s32 2048, 2048
          %2102 = vsyncadd %s2040, %s2101
          %s2103 = smul.addr %s30, 8
          %s2104 = sadd.s32 %s2099, %s2103
          %s2105 = smul.addr %s2104, 64
          %s2106 = scalar_lea.hbm %s4, %s2105
          %s2108 = sshll.u32 1, 14
          %s2109 = sxor.u32 4294967295, %s2108
          %s2112 = sshll.u32 7, 18
          %s2113 = sxor.u32 4294967295, %s2112
          %s2114 = sand.u32 0, %s2113
          %s2116 = sor.u32 %s2114, 0
          %s2118 = sshll.u32 3, 24
          %s2119 = sxor.u32 4294967295, %s2118
          %s2120 = sand.u32 %s2116, %s2119
          %s2122 = sor.u32 %s2120, 0
          %s2123 = sshll.u32 %s2043, 4
          %s2124 = int_to_ptr.vmem [resolvable:$true] %s2123
          %2130 = sst [smem:[#allocation14]] 512
          %s2131 = scalar_lea.smem [#allocation14], 1
          %2132 = sst [smem:[%s2131]] 1024
          %s2133 = scalar_lea.smem [#allocation14], 2
          %2134 = sst [smem:[%s2133]] 4
          %s2135 = scalar_lea.smem [#allocation14], 3
          %2136 = sst [smem:[%s2135]] 128
          %s2137 = scalar_lea.smem [#allocation14], 4
          %2138 = sst [smem:[%s2137]] 128
          %s2139 = scalar_lea.smem [#allocation14], 5
          %2140 = sst [smem:[%s2139]] 8
          %2142 = dma.general %s2124, 2048, %s2106, %s2040, [#allocation13], [#allocation14], %s2122, 0
        $region44: #{tpu_custom_call.1} parent=31 // pred_fallthru
          _
        // Predicated region
        $region45: #{tpu_custom_call.1} parent=31 // pred_check
          %p2143 = pneg %p184
        $region46: #{tpu_custom_call.1} parent=31 // pred_check_branch
          %2145 = sbr.rel (%p2143) target = $region48
        $region47: #{tpu_custom_call.1} parent=31 // pred_region
          #allocation16 [shape = 'u32[6]{0}', space=smem, size = 0x18, scoped, tag = 'DMA stride descriptor']
          %s2146 = smul.u32 2, %s31
          %s2148 = ssub.s32 2048, 2048
          %2149 = vsyncadd %s2045, %s2148
          %s2150 = smul.addr %s30, 8
          %s2151 = sadd.s32 %s2146, %s2150
          %s2152 = smul.addr %s2151, 64
          %s2153 = scalar_lea.hbm %s5, %s2152
          %s2155 = sshll.u32 1, 14
          %s2156 = sxor.u32 4294967295, %s2155
          %s2159 = sshll.u32 7, 18
          %s2160 = sxor.u32 4294967295, %s2159
          %s2161 = sand.u32 0, %s2160
          %s2163 = sor.u32 %s2161, 0
          %s2165 = sshll.u32 3, 24
          %s2166 = sxor.u32 4294967295, %s2165
          %s2167 = sand.u32 %s2163, %s2166
          %s2169 = sor.u32 %s2167, 0
          %s2170 = sshll.u32 %s2048, 4
          %s2171 = int_to_ptr.vmem [resolvable:$true] %s2170
          %2177 = sst [smem:[#allocation16]] 512
          %s2178 = scalar_lea.smem [#allocation16], 1
          %2179 = sst [smem:[%s2178]] 1024
          %s2180 = scalar_lea.smem [#allocation16], 2
          %2181 = sst [smem:[%s2180]] 4
          %s2182 = scalar_lea.smem [#allocation16], 3
          %2183 = sst [smem:[%s2182]] 128
          %s2184 = scalar_lea.smem [#allocation16], 4
          %2185 = sst [smem:[%s2184]] 128
          %s2186 = scalar_lea.smem [#allocation16], 5
          %2187 = sst [smem:[%s2186]] 8
          %2189 = dma.general %s2171, 2048, %s2153, %s2045, [#allocation15], [#allocation16], %s2169, 0
        $region48: #{tpu_custom_call.1} parent=31 // pred_fallthru
          _
      $region32: #{tpu_custom_call.1} parent=5 // pred_fallthru
        _
      %p2190 = scmp.le.s32.totalorder 2, %s21
      // Predicated region
      $region49: #{tpu_custom_call.1} parent=5 // pred_check
        %p2191 = pneg %p2190
      $region50: #{tpu_custom_call.1} parent=5 // pred_check_branch
        %2193 = sbr.rel (%p2191) target = $region52
      $region51: #{tpu_custom_call.1} parent=5 // pred_region
        %s2194 = ssub.s32 %s21, 2
        // Predicated region
        $region53: #{tpu_custom_call.1} parent=51 // pred_check
          %p2195 = pneg %p134
        $region54: #{tpu_custom_call.1} parent=51 // pred_check_branch
          %2197 = sbr.rel (%p2195) target = $region56
        $region55: #{tpu_custom_call.1} parent=51 // pred_region
          %s2198 = sand.u32 %s119, 1
          %s2199 = scalar_lea.sflag [#allocation4], %s2198
          %s2200 = sand.u32 %s119, 1
          %s2201 = smul.addr %s2200, 128
          %s2202 = scalar_lea.vmem [#allocation5], %s2201
          %2203 = dma.done %s2199, 2048
        $region56: #{tpu_custom_call.1} parent=51 // pred_fallthru
          _
        // Predicated region
        $region57: #{tpu_custom_call.1} parent=51 // pred_check
          %p2204 = pneg %p162
        $region58: #{tpu_custom_call.1} parent=51 // pred_check_branch
          %2206 = sbr.rel (%p2204) target = $region60
        $region59: #{tpu_custom_call.1} parent=51 // pred_region
          %s2207 = sand.u32 %s27, 1
          %s2208 = scalar_lea.sflag [#allocation7], %s2207
          %s2209 = sand.u32 %s147, 1
          %s2210 = smul.addr %s2209, 128
          %s2211 = scalar_lea.vmem [#allocation6], %s2210
          %2212 = dma.done %s2208, 2048
        $region60: #{tpu_custom_call.1} parent=51 // pred_fallthru
          _
        // Predicated region
        $region61: #{tpu_custom_call.1} parent=51 // pred_check
          %p2213 = pneg %p190
        $region62: #{tpu_custom_call.1} parent=51 // pred_check_branch
          %2215 = sbr.rel (%p2213) target = $region64
        $region63: #{tpu_custom_call.1} parent=51 // pred_region
          %s2216 = sand.u32 %s27, 1
          %s2217 = scalar_lea.sflag [#allocation7], %s2216
          %s2218 = sand.u32 %s175, 1
          %s2219 = smul.addr %s2218, 128
          %s2220 = scalar_lea.vmem [#allocation8], %s2219
          %2221 = dma.done %s2217, 2048
        $region64: #{tpu_custom_call.1} parent=51 // pred_fallthru
          _
      $region52: #{tpu_custom_call.1} parent=5 // pred_fallthru
        _
    $region6: #{tpu_custom_call.1} parent=1 // loop_footer
      %s25 = sadd.s32 1, %s21
    $region7: #{tpu_custom_call.1} parent=1 // loop_footer_branch
      %20 = sbr.rel target = $region3
    $region8: #{tpu_custom_call.1} parent=1 // loop_exit
      _
    %2222 = vsyncpa [#allocation3], 1
    %s2223 = scalar_lea.sflag [#allocation3], 1
    %2224 = vsyncpa %s2223, 1
    %2225 = vsyncpa [#allocation4], 1
    %s2226 = scalar_lea.sflag [#allocation4], 1
    %2227 = vsyncpa %s2226, 1
    %2228 = vsyncpa [#allocation7], 1
    %s2229 = scalar_lea.sflag [#allocation7], 1
    %2230 = vsyncpa %s2229, 1

</llo_original>
